<compile_context>
chip_gen: v5e
topology: v5e:2x2
jax: 0.10.0
libtpu: 0.0.40
codegen_flags: <defaults>
</compile_context>

<pallas_src>
import numpy as np
import jax
import jax.numpy as jnp
from jax.experimental import pallas as pl
from jax.experimental.pallas import tpu as pltpu


def _round_up(x, m):
    return ((x + m - 1) // m) * m


# ----------------------------------------------------------------------------
# Fused Conv1d (+ bias, + optional ReLU) kernel
# ----------------------------------------------------------------------------
def _make_conv_kernel(num_groups, apply_relu):
    """num_groups = ceil(K / stride) regrouped weight slabs."""

    def kernel(x_ref, w_ref, b_ref, o_ref):
        # x_ref : (1, L_phase, S*Cin)  -- full padded length for this batch elem
        # w_ref : (M, S*Cin, Cout)     -- tap groups (zero-padded at the edge)
        # b_ref : (1, Cout)
        # o_ref : (1, T_tile, Cout)
        j = pl.program_id(1)
        t_tile = o_ref.shape[1]
        c_out = o_ref.shape[2]
        sc = w_ref.shape[1]

        t0 = pl.multiple_of(j * t_tile, 8)
        acc = jnp.zeros((t_tile, c_out), jnp.float32)
        for m in range(num_groups):
            xm = x_ref[0, pl.ds(t0 + m, t_tile), :]          # (T_tile, S*Cin)
            if sc < 8:
                # Tiny contraction (first layer, Cin == 1): VPU broadcast
                # multiply-accumulate instead of a nearly-empty MXU pass.
                for c in range(sc):
                    acc = acc + xm[:, c:c + 1] * w_ref[m, c:c + 1, :]
            else:
                acc = acc + jnp.dot(xm, w_ref[m],
                                    preferred_element_type=jnp.float32)
        y = acc + b_ref[...]
        if apply_relu:
            y = jnp.maximum(y, 0.0)
        o_ref[0] = y

    return kernel


def _regroup_weight(w, stride):
    """(Cout, Cin, K) torch-layout weight -> (ceil(K/S), S*Cin, Cout)."""
    c_out, c_in, k = w.shape
    m = -(-k // stride)
    w_pad = jnp.pad(w, ((0, 0), (0, 0), (0, m * stride - k)))
    w4 = w_pad.reshape(c_out, c_in, m, stride)               # [co, ci, m, p]
    return jnp.transpose(w4, (2, 3, 1, 0)).reshape(m, stride * c_in, c_out)


def conv1d_pallas(x_cl, w, b, stride, apply_relu, t_tile=256):
    """x_cl: (B, L, Cin) channels-last.  w: (Cout, Cin, K) torch layout, b: (Cout,)."""
    bsz, length, c_in = x_cl.shape
    c_out, c_in2, k = w.shape
    assert c_in2 == c_in
    pad = k // 2
    l_out = (length + 2 * pad - k) // stride + 1

    t_blk = min(_round_up(t_tile, 8), _round_up(l_out, 8))
    n_t = pl.cdiv(l_out, t_blk)
    n_grp = pl.cdiv(k, stride)

    # Pad so that (a) all real zero-padded samples are kept and (b) every
    # in-kernel slice (including the ragged last tile) stays in bounds.
    l_alloc = _round_up(max((n_t * t_blk - 1) * stride + k, length + 2 * pad),
                        stride)
    l_phase = l_alloc // stride
    x_pad = jnp.pad(x_cl, ((0, 0), (pad, l_alloc - length - pad), (0, 0)))
    # Fold the stride into the lane axis: (B, L_alloc, Cin) -> (B, L_phase, S*Cin)
    x_r = x_pad.reshape(bsz, l_phase, stride * c_in)

    w_g = _regroup_weight(w, stride)                         # (n_grp, S*Cin, Cout)
    b_2 = b.reshape(1, c_out)

    out = pl.pallas_call(
        _make_conv_kernel(n_grp, apply_relu),
        out_shape=jax.ShapeDtypeStruct((bsz, n_t * t_blk, c_out), jnp.float32),
        grid=(bsz, n_t),
        in_specs=[
            pl.BlockSpec((1, l_phase, stride * c_in), lambda bb, jj: (bb, 0, 0)),
            pl.BlockSpec((n_grp, stride * c_in, c_out), lambda bb, jj: (0, 0, 0)),
            pl.BlockSpec((1, c_out), lambda bb, jj: (0, 0)),
        ],
        out_specs=pl.BlockSpec((1, t_blk, c_out), lambda bb, jj: (bb, jj, 0)),
        compiler_params=pltpu.CompilerParams(
            dimension_semantics=("parallel", "parallel")),
    )(x_r, w_g, b_2)
    return out[:, :l_out, :]


# ----------------------------------------------------------------------------
# Encoder forward (Pallas) + parameter init + pure-JAX reference
# ----------------------------------------------------------------------------
def init_encoder(key, channels, kernel_size, strides, encoder_dims):
    """PyTorch-default-style uniform init: bound = 1/sqrt(Cin * K)."""
    in_chs = [1] + [channels] * (len(strides) - 1)
    out_chs = [channels] * (len(strides) - 1) + [encoder_dims]
    params = []
    for i, s in enumerate(strides):
        key, k1, k2 = jax.random.split(key, 3)
        c_in, c_out = in_chs[i], out_chs[i]
        bound = 1.0 / np.sqrt(c_in * kernel_size)
        w = jax.random.uniform(k1, (c_out, c_in, kernel_size), jnp.float32,
                               -bound, bound)
        b = jax.random.uniform(k2, (c_out,), jnp.float32, -bound, bound)
        params.append((w, b, int(s)))
    return params


def encoder_forward(params, x):
    """x: (B, 1, L) raw waveform -> (B, encoder_dims, L_out)."""
    h = jnp.transpose(x, (0, 2, 1))                          # channels-last
    n_layers = len(params)
    for i, (w, b, s) in enumerate(params):
        h = conv1d_pallas(h, w, b, s, apply_relu=(i != n_layers - 1))
    return jnp.transpose(h, (0, 2, 1))                       # back to (B, C, L)


def encoder_reference(params, x):
    """Pure-JAX reference (lax.conv), same semantics as the PyTorch module."""
    h = x
    n_layers = len(params)
    for i, (w, b, s) in enumerate(params):
        pad = w.shape[2] // 2
        h = jax.lax.conv_general_dilated(
            h, w, window_strides=(s,), padding=[(pad, pad)],
            dimension_numbers=("NCH", "OIH", "NCH"))
        h = h + b[None, :, None]
        if i != n_layers - 1:
            h = jnp.maximum(h, 0.0)
    return h


# ----------------------------------------------------------------------------
if __name__ == "__main__":
    # Small config consistent with the module:
    #   args.channels=32, args.kernel_size=5, args.strides=[2, 2, 2],
    #   args.encoder_dims=16
    B, L = 2, 512
    CHANNELS = 32
    KERNEL_SIZE = 5
    STRIDES = (2, 2, 2)
    ENCODER_DIMS = 16

    root = jax.random.PRNGKey(0)
    k_param, k_x = jax.random.split(root)

    params = init_encoder(k_param, CHANNELS, KERNEL_SIZE, STRIDES, ENCODER_DIMS)
    x = jax.random.normal(k_x, (B, 1, L), jnp.float32)       # raw waveform

    out = encoder_forward(params, x)
    jax.block_until_ready(out)

    # Expected output length after three stride-2 convs with "same"-ish padding.
    l_out = L
    for s in STRIDES:
        l_out = (l_out + 2 * (KERNEL_SIZE // 2) - KERNEL_SIZE) // s + 1
    assert out.shape == (B, ENCODER_DIMS, l_out), out.shape

    ref = encoder_reference(params, x)
    jax.block_until_ready(ref)
    rel_err = float(jnp.linalg.norm(out - ref) / (jnp.linalg.norm(ref) + 1e-12))
    assert rel_err < 2e-2, f"relative L2 error too large: {rel_err}"

    print("KERNEL_OK")
</pallas_src>

<mosaic_0001>
module attributes {stable_mosaic.version = 11 : i64} {
  func.func @kernel(%arg0: i32, %arg1: i32, %arg2: memref<1x258x2xf32, #tpu.memory_space<vmem>>, %arg3: memref<3x2x32xf32, #tpu.memory_space<vmem>>, %arg4: memref<1x32xf32, #tpu.memory_space<vmem>>, %arg5: memref<1x256x32xf32, #tpu.memory_space<vmem>>) attributes {dimension_semantics = [#tpu.dimension_semantics<parallel>, #tpu.dimension_semantics<parallel>], iteration_bounds = array<i64: 2, 1>, scalar_prefetch = 0 : i64, scratch_operands = 0 : i64, tpu.core_type = #tpu.core_type<tc>, window_params = [{transform_indices = @transform_0, window_bounds = array<i64: 1, 258, 2>}, {pipeline_mode = #tpu.pipeline_mode<synchronous>, transform_indices = @transform_1, window_bounds = array<i64: 3, 2, 32>}, {pipeline_mode = #tpu.pipeline_mode<synchronous>, transform_indices = @transform_2, window_bounds = array<i64: 1, 32>}, {transform_indices = @transform_3, window_bounds = array<i64: 1, 256, 32>}]} {
    %c256_i32 = arith.constant 256 : i32
    %0 = arith.muli %arg1, %c256_i32 : i32
    %1 = tpu.assume_multiple %0, 8 : i32
    %cst = arith.constant 0.000000e+00 : f32
    %2 = vector.broadcast %cst : f32 to vector<256x32xf32>
    %c0_i32 = arith.constant 0 : i32
    %3 = arith.addi %1, %c0_i32 : i32
    %c0 = arith.constant 0 : index
    %4 = arith.index_cast %3 : i32 to index
    %c0_0 = arith.constant 0 : index
    %5 = vector.load %arg2[%c0, %4, %c0_0] : memref<1x258x2xf32, #tpu.memory_space<vmem>>, vector<1x256x2xf32>
    %6 = vector.shape_cast %5 : vector<1x256x2xf32> to vector<256x2xf32>
    %7 = vector.extract_strided_slice %6 {offsets = [0, 0], sizes = [256, 1], strides = [1, 1]} : vector<256x2xf32> to vector<256x1xf32>
    %c0_1 = arith.constant 0 : index
    %c0_2 = arith.constant 0 : index
    %c0_3 = arith.constant 0 : index
    %8 = vector.load %arg3[%c0_1, %c0_2, %c0_3] : memref<3x2x32xf32, #tpu.memory_space<vmem>>, vector<1x1x32xf32>
    %9 = vector.shape_cast %8 : vector<1x1x32xf32> to vector<1x32xf32>
    %10 = vector.broadcast %7 : vector<256x1xf32> to vector<256x32xf32>
    %11 = vector.broadcast %9 : vector<1x32xf32> to vector<256x32xf32>
    %12 = arith.mulf %10, %11 : vector<256x32xf32>
    %13 = arith.addf %2, %12 : vector<256x32xf32>
    %14 = vector.extract_strided_slice %6 {offsets = [0, 1], sizes = [256, 1], strides = [1, 1]} : vector<256x2xf32> to vector<256x1xf32>
    %c0_4 = arith.constant 0 : index
    %c1 = arith.constant 1 : index
    %c0_5 = arith.constant 0 : index
    %15 = vector.load %arg3[%c0_4, %c1, %c0_5] : memref<3x2x32xf32, #tpu.memory_space<vmem>>, vector<1x1x32xf32>
    %16 = vector.shape_cast %15 : vector<1x1x32xf32> to vector<1x32xf32>
    %17 = vector.broadcast %14 : vector<256x1xf32> to vector<256x32xf32>
    %18 = vector.broadcast %16 : vector<1x32xf32> to vector<256x32xf32>
    %19 = arith.mulf %17, %18 : vector<256x32xf32>
    %20 = arith.addf %13, %19 : vector<256x32xf32>
    %c1_i32 = arith.constant 1 : i32
    %21 = arith.addi %1, %c1_i32 : i32
    %c0_6 = arith.constant 0 : index
    %22 = arith.index_cast %21 : i32 to index
    %c0_7 = arith.constant 0 : index
    %23 = vector.load %arg2[%c0_6, %22, %c0_7] : memref<1x258x2xf32, #tpu.memory_space<vmem>>, vector<1x256x2xf32>
    %24 = vector.shape_cast %23 : vector<1x256x2xf32> to vector<256x2xf32>
    %25 = vector.extract_strided_slice %24 {offsets = [0, 0], sizes = [256, 1], strides = [1, 1]} : vector<256x2xf32> to vector<256x1xf32>
    %c1_8 = arith.constant 1 : index
    %c0_9 = arith.constant 0 : index
    %c0_10 = arith.constant 0 : index
    %26 = vector.load %arg3[%c1_8, %c0_9, %c0_10] : memref<3x2x32xf32, #tpu.memory_space<vmem>>, vector<1x1x32xf32>
    %27 = vector.shape_cast %26 : vector<1x1x32xf32> to vector<1x32xf32>
    %28 = vector.broadcast %25 : vector<256x1xf32> to vector<256x32xf32>
    %29 = vector.broadcast %27 : vector<1x32xf32> to vector<256x32xf32>
    %30 = arith.mulf %28, %29 : vector<256x32xf32>
    %31 = arith.addf %20, %30 : vector<256x32xf32>
    %32 = vector.extract_strided_slice %24 {offsets = [0, 1], sizes = [256, 1], strides = [1, 1]} : vector<256x2xf32> to vector<256x1xf32>
    %c1_11 = arith.constant 1 : index
    %c1_12 = arith.constant 1 : index
    %c0_13 = arith.constant 0 : index
    %33 = vector.load %arg3[%c1_11, %c1_12, %c0_13] : memref<3x2x32xf32, #tpu.memory_space<vmem>>, vector<1x1x32xf32>
    %34 = vector.shape_cast %33 : vector<1x1x32xf32> to vector<1x32xf32>
    %35 = vector.broadcast %32 : vector<256x1xf32> to vector<256x32xf32>
    %36 = vector.broadcast %34 : vector<1x32xf32> to vector<256x32xf32>
    %37 = arith.mulf %35, %36 : vector<256x32xf32>
    %38 = arith.addf %31, %37 : vector<256x32xf32>
    %c2_i32 = arith.constant 2 : i32
    %39 = arith.addi %1, %c2_i32 : i32
    %c0_14 = arith.constant 0 : index
    %40 = arith.index_cast %39 : i32 to index
    %c0_15 = arith.constant 0 : index
    %41 = vector.load %arg2[%c0_14, %40, %c0_15] : memref<1x258x2xf32, #tpu.memory_space<vmem>>, vector<1x256x2xf32>
    %42 = vector.shape_cast %41 : vector<1x256x2xf32> to vector<256x2xf32>
    %43 = vector.extract_strided_slice %42 {offsets = [0, 0], sizes = [256, 1], strides = [1, 1]} : vector<256x2xf32> to vector<256x1xf32>
    %c2 = arith.constant 2 : index
    %c0_16 = arith.constant 0 : index
    %c0_17 = arith.constant 0 : index
    %44 = vector.load %arg3[%c2, %c0_16, %c0_17] : memref<3x2x32xf32, #tpu.memory_space<vmem>>, vector<1x1x32xf32>
    %45 = vector.shape_cast %44 : vector<1x1x32xf32> to vector<1x32xf32>
    %46 = vector.broadcast %43 : vector<256x1xf32> to vector<256x32xf32>
    %47 = vector.broadcast %45 : vector<1x32xf32> to vector<256x32xf32>
    %48 = arith.mulf %46, %47 : vector<256x32xf32>
    %49 = arith.addf %38, %48 : vector<256x32xf32>
    %50 = vector.extract_strided_slice %42 {offsets = [0, 1], sizes = [256, 1], strides = [1, 1]} : vector<256x2xf32> to vector<256x1xf32>
    %c2_18 = arith.constant 2 : index
    %c1_19 = arith.constant 1 : index
    %c0_20 = arith.constant 0 : index
    %51 = vector.load %arg3[%c2_18, %c1_19, %c0_20] : memref<3x2x32xf32, #tpu.memory_space<vmem>>, vector<1x1x32xf32>
    %52 = vector.shape_cast %51 : vector<1x1x32xf32> to vector<1x32xf32>
    %53 = vector.broadcast %50 : vector<256x1xf32> to vector<256x32xf32>
    %54 = vector.broadcast %52 : vector<1x32xf32> to vector<256x32xf32>
    %55 = arith.mulf %53, %54 : vector<256x32xf32>
    %56 = arith.addf %49, %55 : vector<256x32xf32>
    %c0_21 = arith.constant 0 : index
    %c0_22 = arith.constant 0 : index
    %57 = vector.load %arg4[%c0_21, %c0_22] : memref<1x32xf32, #tpu.memory_space<vmem>>, vector<1x32xf32>
    %58 = vector.broadcast %57 : vector<1x32xf32> to vector<256x32xf32>
    %59 = arith.addf %56, %58 : vector<256x32xf32>
    %cst_23 = arith.constant 0.000000e+00 : f32
    %60 = vector.broadcast %cst_23 : f32 to vector<256x32xf32>
    %61 = arith.maximumf %59, %60 : vector<256x32xf32>
    %c0_24 = arith.constant 0 : index
    %c0_25 = arith.constant 0 : index
    %c0_26 = arith.constant 0 : index
    %62 = vector.load %arg5[%c0_24, %c0_25, %c0_26] : memref<1x256x32xf32, #tpu.memory_space<vmem>>, vector<1x256x32xf32>
    %63 = vector.shape_cast %62 : vector<1x256x32xf32> to vector<256x32xf32>
    %64 = vector.shape_cast %61 : vector<256x32xf32> to vector<1x256x32xf32>
    tpu.vector_store %arg5[%c0_24, %c0_25, %c0_26], %64 {strides = array<i32>} : memref<1x256x32xf32, #tpu.memory_space<vmem>>, vector<1x256x32xf32>,
    return
  }
  func.func @transform_0(%arg0: i32, %arg1: i32) -> (i32, i32, i32) {
    %c0_i32 = arith.constant 0 : i32
    %c0_i32_0 = arith.constant 0 : i32
    %c0_i32_1 = arith.constant 0 : i32
    return %arg0, %c0_i32, %c0_i32_0 : i32, i32, i32
  }
  func.func @transform_1(%arg0: i32, %arg1: i32) -> (i32, i32, i32) {
    %c0_i32 = arith.constant 0 : i32
    %c0_i32_0 = arith.constant 0 : i32
    %c0_i32_1 = arith.constant 0 : i32
    %c0_i32_2 = arith.constant 0 : i32
    return %c0_i32, %c0_i32_0, %c0_i32_1 : i32, i32, i32
  }
  func.func @transform_2(%arg0: i32, %arg1: i32) -> (i32, i32) {
    %c0_i32 = arith.constant 0 : i32
    %c0_i32_0 = arith.constant 0 : i32
    %c0_i32_1 = arith.constant 0 : i32
    return %c0_i32, %c0_i32_0 : i32, i32
  }
  func.func @transform_3(%arg0: i32, %arg1: i32) -> (i32, i32, i32) {
    %c0_i32 = arith.constant 0 : i32
    %c0_i32_0 = arith.constant 0 : i32
    return %arg0, %arg1, %c0_i32 : i32, i32, i32
  }
}

</mosaic_0001>

<llo_original>
// kernel: tpu_custom_call.1
$region0: #{tpu_custom_call.1}
  #allocation0 [shape = 'u32[]', space=smem, size = 0x4, offset = 0x4, fixed_abs, tag = 'smem constant byte address 0x4 - core index']
  #allocation1 [shape = 'u32[72,128]{1,0:T(1,128)}', space=vmem, size = 0x9000, scoped, tag = 'internal scratch']
  %s0 = inlined_call_operand.vmem [shape: f32[2,258,2], index: 0, kind: input, shape index: {}]
  %s1 = inlined_call_operand.vmem [shape: f32[3,2,32], index: 1, kind: input, shape index: {}]
  %s2 = inlined_call_operand.vmem [shape: f32[1,32], index: 2, kind: input, shape index: {}]
  %s3 = inlined_call_operand.vmem [shape: f32[2,256,32], index: 3, kind: output, shape index: {}]
  %s4 = sld [smem:[#allocation0]]
  $region45: #{tpu_custom_call.1} parent=0
    _
  %s6 = ssub.s32 1, %s4
  %s7 = scalar_select 0, %s6, %s4
  loop: start=0, step=1, limit=4
  $region2: #{tpu_custom_call.1} parent=0 // loop_pre_header
    _
  $region3: #{tpu_custom_call.1} parent=0 // loop_header
    %s9 = sphi 0, %s13
    %p10 = scmp.ge.s32.totalorder %s9, 4
    %s16 = sphi 0, %s28
    %s17 = sphi 0, %s24
    %s18 = sphi 0, %s16
    %s19 = sphi 0, %s17
    %s20 = sphi 0, %s18
    %s21 = sphi 0, %s19
    %s31 = sphi 0, %s33
    %s34 = sphi 0, %s31
    %s35 = sphi 0, %s34
    %s51 = sphi 0, %s35
    %s55 = sphi 0, %s55
    %s57 = sphi 0, %s55
    %s58 = sphi 0, %s57
    %s72 = sphi 0, %s58
    %s76 = sphi 0, %s76
    %s78 = sphi 0, %s76
    %s79 = sphi 0, %s78
    %s93 = sphi 0, %s79
    %s101 = sphi 0, %s103
    %s104 = sphi 0, %s101
    %s105 = sphi 0, %s104
    %s121 = sphi 0, %s105
  $region4: #{tpu_custom_call.1} parent=0 // loop_header_branch
    %12 = sbr.rel (%p10) target = $region8
  $region5: #{tpu_custom_call.1} parent=0 // loop_body
    %s14 = ssub.s32 %s9, 1
    %s15 = ssub.s32 %s9, 2
    %s22 = sadd.s32 1, %s17
    %p23 = scmp.ge.s32.totalorder %s22, 1
    %s24 = scalar_select %p23, 0, %s22
    %s25 = sadd.s32 1, %s16
    %s26 = scalar_select %p23, %s25, %s16
    %p27 = scmp.ge.s32.totalorder %s26, 2
    %s28 = scalar_select %p27, 0, %s26
    %s29 = ssub.s32 %s16, %s28
    %p30 = scmp.eq.s32.totalorder %s29, 0
    %s32 = sadd.s32 %s31, 1
    %s33 = scalar_select %p30, %s31, %s32
    %p36 = pneg %p30
    %p37 = scmp.eq.s32.totalorder %s9, 1
    %p38 = por %p36, %p37
    %p39 = scmp.ne.s32.totalorder %s31, %s34
    %p40 = scmp.eq.s32.totalorder %s9, 0
    %p41 = por %p39, %p40
    %p42 = scmp.ne.s32.totalorder %s31, %s34
    %p43 = scmp.eq.s32.totalorder %s14, 1
    %p44 = por %p42, %p43
    %p45 = scmp.ne.s32.totalorder %s34, %s35
    %p46 = scmp.eq.s32.totalorder %s14, 0
    %p47 = por %p45, %p46
    %p48 = scmp.ne.s32.totalorder %s34, %s35
    %p49 = scmp.eq.s32.totalorder %s15, 1
    %p50 = por %p48, %p49
    %p52 = scmp.ne.s32.totalorder %s35, %s51
    %p53 = scmp.eq.s32.totalorder %s15, 0
    %p54 = por %p52, %p53
    %s56 = sadd.s32 %s55, 1
    %p59 = scmp.eq.s32.totalorder %s9, 1
    %p60 = scmp.ne.s32.totalorder %s55, %s57
    %p61 = scmp.eq.s32.totalorder %s9, 0
    %p62 = por %p60, %p61
    %p63 = scmp.ne.s32.totalorder %s55, %s57
    %p64 = scmp.eq.s32.totalorder %s14, 1
    %p65 = por %p63, %p64
    %p66 = scmp.ne.s32.totalorder %s57, %s58
    %p67 = scmp.eq.s32.totalorder %s14, 0
    %p68 = por %p66, %p67
    %p69 = scmp.ne.s32.totalorder %s57, %s58
    %p70 = scmp.eq.s32.totalorder %s15, 1
    %p71 = por %p69, %p70
    %p73 = scmp.ne.s32.totalorder %s58, %s72
    %p74 = scmp.eq.s32.totalorder %s15, 0
    %p75 = por %p73, %p74
    %s77 = sadd.s32 %s76, 1
    %p80 = scmp.eq.s32.totalorder %s9, 1
    %p81 = scmp.ne.s32.totalorder %s76, %s78
    %p82 = scmp.eq.s32.totalorder %s9, 0
    %p83 = por %p81, %p82
    %p84 = scmp.ne.s32.totalorder %s76, %s78
    %p85 = scmp.eq.s32.totalorder %s14, 1
    %p86 = por %p84, %p85
    %p87 = scmp.ne.s32.totalorder %s78, %s79
    %p88 = scmp.eq.s32.totalorder %s14, 0
    %p89 = por %p87, %p88
    %p90 = scmp.ne.s32.totalorder %s78, %s79
    %p91 = scmp.eq.s32.totalorder %s15, 1
    %p92 = por %p90, %p91
    %p94 = scmp.ne.s32.totalorder %s79, %s93
    %p95 = scmp.eq.s32.totalorder %s15, 0
    %p96 = por %p94, %p95
    %s97 = ssub.s32 %s16, %s28
    %s98 = ssub.s32 %s17, %s24
    %s99 = sor.u32 %s97, %s98
    %p100 = scmp.eq.s32.totalorder %s99, 0
    %s102 = sadd.s32 %s101, 1
    %s103 = scalar_select %p100, %s101, %s102
    %p106 = pneg %p100
    %p107 = scmp.eq.s32.totalorder %s9, 1
    %p108 = por %p106, %p107
    %p109 = scmp.ne.s32.totalorder %s101, %s104
    %p110 = scmp.eq.s32.totalorder %s9, 0
    %p111 = por %p109, %p110
    %p112 = scmp.ne.s32.totalorder %s101, %s104
    %p113 = scmp.eq.s32.totalorder %s14, 1
    %p114 = por %p112, %p113
    %p115 = scmp.ne.s32.totalorder %s104, %s105
    %p116 = scmp.eq.s32.totalorder %s14, 0
    %p117 = por %p115, %p116
    %p118 = scmp.ne.s32.totalorder %s104, %s105
    %p119 = scmp.eq.s32.totalorder %s15, 1
    %p120 = por %p118, %p119
    %p122 = scmp.ne.s32.totalorder %s105, %s121
    %p123 = scmp.eq.s32.totalorder %s15, 0
    %p124 = por %p122, %p123
    %p125 = scmp.le.s32.totalorder 1, %s9
    %p126 = scmp.lt.s32.totalorder %s9, 3
    %p127 = pnand %p125, %p126
    %p128 = pneg %p127
    // Predicated region
    $region9: #{tpu_custom_call.1} parent=5 // pred_check
      _
    $region10: #{tpu_custom_call.1} parent=5 // pred_check_branch
      %130 = sbr.rel (%p127) target = $region12
    $region11: #{tpu_custom_call.1} parent=5 // pred_region
      %s131 = ssub.s32 %s9, 1
      // Predicated region
      $region13: #{tpu_custom_call.1} parent=11 // pred_check
        %p132 = pneg %p68
      $region14: #{tpu_custom_call.1} parent=11 // pred_check_branch
        %134 = sbr.rel (%p132) target = $region16
      $region15: #{tpu_custom_call.1} parent=11 // pred_region
        _
      $region16: #{tpu_custom_call.1} parent=11 // pred_fallthru
        _
      // Predicated region
      $region17: #{tpu_custom_call.1} parent=11 // pred_check
        %p135 = pneg %p89
      $region18: #{tpu_custom_call.1} parent=11 // pred_check_branch
        %137 = sbr.rel (%p135) target = $region20
      $region19: #{tpu_custom_call.1} parent=11 // pred_region
        _
      $region20: #{tpu_custom_call.1} parent=11 // pred_fallthru
        _
    $region12: #{tpu_custom_call.1} parent=5 // pred_fallthru
      _
    %p138 = scmp.lt.s32.totalorder %s9, 2
    // Predicated region
    $region21: #{tpu_custom_call.1} parent=5 // pred_check
      %p139 = pneg %p138
    $region22: #{tpu_custom_call.1} parent=5 // pred_check_branch
      %141 = sbr.rel (%p139) target = $region24
    $region23: #{tpu_custom_call.1} parent=5 // pred_region
      // Predicated region
      $region25: #{tpu_custom_call.1} parent=23 // pred_check
        %p142 = pneg %p41
      $region26: #{tpu_custom_call.1} parent=23 // pred_check_branch
        %144 = sbr.rel (%p142) target = $region28
      $region27: #{tpu_custom_call.1} parent=23 // pred_region
        %p145 = scmp.lt.s32.totalorder %s16, 1
        %s146 = scalar_select %p145, %s16, 1
        %s147 = smul.addr %s146, 33
        %s148 = smul.addr %s147, 8
        %s149 = scalar_lea.vmem %s0, %s148
      $region28: #{tpu_custom_call.1} parent=23 // pred_fallthru
        _
    $region24: #{tpu_custom_call.1} parent=5 // pred_fallthru
      _
    %p150 = scmp.le.s32.totalorder 1, %s9
    %p151 = scmp.lt.s32.totalorder %s9, 3
    %p152 = pnand %p150, %p151
    %p153 = pneg %p152
    // Predicated region
    $region29: #{tpu_custom_call.1} parent=5 // pred_check
      _
    $region30: #{tpu_custom_call.1} parent=5 // pred_check_branch
      %155 = sbr.rel (%p152) target = $region32
    $region31: #{tpu_custom_call.1} parent=5 // pred_region
      %s156 = ssub.s32 %s9, 1
      %p157 = scmp.lt.s32.totalorder %s18, 1
      %s158 = scalar_select %p157, %s18, 1
      %s159 = smul.addr %s158, 33
      %s160 = smul.addr %s159, 8
      %s161 = scalar_lea.vmem %s0, %s160
      %p162 = pneg %p47
      %p163 = pneg %p44
      %p164 = pneg %p68
      %p165 = pneg %p65
      %p166 = pneg %p89
      %p167 = pneg %p86
      %p168 = pneg %p117
      %p169 = pneg %p114
      %s170 = smul.u32 32, %s19
      %p171 = scmp.lt.s32.totalorder %s18, 1
      %s172 = scalar_select %p171, %s18, 1
      %p173 = scmp.lt.s32.totalorder %s170, 31
      %s174 = scalar_select %p173, %s170, 31
      %s175 = smul.addr %s172, 32
      %s176 = sadd.s32 %s174, %s175
      %s177 = smul.addr %s176, 8
      %s178 = scalar_lea.vmem %s3, %s177
      %p179 = scmp.lt.s32.totalorder %s18, 1
      %s180 = scalar_select %p179, %s18, 1
      %s181 = smul.addr %s180, 33
      %s182 = smul.addr %s181, 8
      %s183 = scalar_lea.vmem %s0, %s182
      %s184 = smul.u32 32, %s19
      %p185 = scmp.lt.s32.totalorder %s18, 1
      %s186 = scalar_select %p185, %s18, 1
      %p187 = scmp.lt.s32.totalorder %s184, 31
      %s188 = scalar_select %p187, %s184, 31
      %s189 = smul.addr %s186, 32
      %s190 = sadd.s32 %s188, %s189
      %s191 = smul.addr %s190, 8
      %s192 = scalar_lea.vmem %s3, %s191
      %s193 = smul.u32 32, %s19
      %s194 = smul.u32 %s19, 256
      %s195 = scalar_lea.vmem %s183, %s194
      %v196 = vld [vmem:[%s195] sm:$0xff]
      %v197 = vld [vmem:[%s195 + $0x8] sm:$0xff]
      %v198 = vld [vmem:[%s195 + $0x10] sm:$0xff]
      %v199 = vld [vmem:[%s195 + $0x18] sm:$0xff]
      %v200 = vld [vmem:[%s195 + $0x20] sm:$0xff]
      %v201 = vld [vmem:[%s195 + $0x28] sm:$0xff]
      %v202 = vld [vmem:[%s195 + $0x30] sm:$0xff]
      %v203 = vld [vmem:[%s195 + $0x38] sm:$0xff]
      %v204 = vld [vmem:[%s195 + $0x40] sm:$0xff]
      %v205 = vld [vmem:[%s195 + $0x48] sm:$0xff]
      %v206 = vld [vmem:[%s195 + $0x50] sm:$0xff]
      %v207 = vld [vmem:[%s195 + $0x58] sm:$0xff]
      %v208 = vld [vmem:[%s195 + $0x60] sm:$0xff]
      %v209 = vld [vmem:[%s195 + $0x68] sm:$0xff]
      %v210 = vld [vmem:[%s195 + $0x70] sm:$0xff]
      %v211 = vld [vmem:[%s195 + $0x78] sm:$0xff]
      %v212 = vld [vmem:[%s195 + $0x80] sm:$0xff]
      %v213 = vld [vmem:[%s195 + $0x88] sm:$0xff]
      %v214 = vld [vmem:[%s195 + $0x90] sm:$0xff]
      %v215 = vld [vmem:[%s195 + $0x98] sm:$0xff]
      %v216 = vld [vmem:[%s195 + $0xa0] sm:$0xff]
      %v217 = vld [vmem:[%s195 + $0xa8] sm:$0xff]
      %v218 = vld [vmem:[%s195 + $0xb0] sm:$0xff]
      %v219 = vld [vmem:[%s195 + $0xb8] sm:$0xff]
      %v220 = vld [vmem:[%s195 + $0xc0] sm:$0xff]
      %v221 = vld [vmem:[%s195 + $0xc8] sm:$0xff]
      %v222 = vld [vmem:[%s195 + $0xd0] sm:$0xff]
      %v223 = vld [vmem:[%s195 + $0xd8] sm:$0xff]
      %v224 = vld [vmem:[%s195 + $0xe0] sm:$0xff]
      %v225 = vld [vmem:[%s195 + $0xe8] sm:$0xff]
      %v226 = vld [vmem:[%s195 + $0xf0] sm:$0xff]
      %v227 = vld [vmem:[%s195 + $0xf8] sm:$0xff]
      %v228 = vld [vmem:[%s1] sm:$0x1]
      %230 = vset.pattern.permute.xlu0 0
      %231 = vperm.xlu0 %230, %v196
      %v232 = vpop.permute.xlu0 %231
      %235 = vset.pattern.permute.xlu0 0
      %236 = vperm.xlu0 %235, %v197
      %v237 = vpop.permute.xlu0 %236
      %240 = vset.pattern.permute.xlu0 0
      %241 = vperm.xlu0 %240, %v198
      %v242 = vpop.permute.xlu0 %241
      %245 = vset.pattern.permute.xlu0 0
      %246 = vperm.xlu0 %245, %v199
      %v247 = vpop.permute.xlu0 %246
      %250 = vset.pattern.permute.xlu0 0
      %251 = vperm.xlu0 %250, %v200
      %v252 = vpop.permute.xlu0 %251
      %255 = vset.pattern.permute.xlu0 0
      %256 = vperm.xlu0 %255, %v201
      %v257 = vpop.permute.xlu0 %256
      %260 = vset.pattern.permute.xlu0 0
      %261 = vperm.xlu0 %260, %v202
      %v262 = vpop.permute.xlu0 %261
      %265 = vset.pattern.permute.xlu0 0
      %266 = vperm.xlu0 %265, %v203
      %v267 = vpop.permute.xlu0 %266
      %270 = vset.pattern.permute.xlu0 0
      %271 = vperm.xlu0 %270, %v204
      %v272 = vpop.permute.xlu0 %271
      %275 = vset.pattern.permute.xlu0 0
      %276 = vperm.xlu0 %275, %v205
      %v277 = vpop.permute.xlu0 %276
      %280 = vset.pattern.permute.xlu0 0
      %281 = vperm.xlu0 %280, %v206
      %v282 = vpop.permute.xlu0 %281
      %285 = vset.pattern.permute.xlu0 0
      %286 = vperm.xlu0 %285, %v207
      %v287 = vpop.permute.xlu0 %286
      %290 = vset.pattern.permute.xlu0 0
      %291 = vperm.xlu0 %290, %v208
      %v292 = vpop.permute.xlu0 %291
      %295 = vset.pattern.permute.xlu0 0
      %296 = vperm.xlu0 %295, %v209
      %v297 = vpop.permute.xlu0 %296
      %300 = vset.pattern.permute.xlu0 0
      %301 = vperm.xlu0 %300, %v210
      %v302 = vpop.permute.xlu0 %301
      %305 = vset.pattern.permute.xlu0 0
      %306 = vperm.xlu0 %305, %v211
      %v307 = vpop.permute.xlu0 %306
      %310 = vset.pattern.permute.xlu0 0
      %311 = vperm.xlu0 %310, %v212
      %v312 = vpop.permute.xlu0 %311
      %315 = vset.pattern.permute.xlu0 0
      %316 = vperm.xlu0 %315, %v213
      %v317 = vpop.permute.xlu0 %316
      %320 = vset.pattern.permute.xlu0 0
      %321 = vperm.xlu0 %320, %v214
      %v322 = vpop.permute.xlu0 %321
      %325 = vset.pattern.permute.xlu0 0
      %326 = vperm.xlu0 %325, %v215
      %v327 = vpop.permute.xlu0 %326
      %330 = vset.pattern.permute.xlu0 0
      %331 = vperm.xlu0 %330, %v216
      %v332 = vpop.permute.xlu0 %331
      %335 = vset.pattern.permute.xlu0 0
      %336 = vperm.xlu0 %335, %v217
      %v337 = vpop.permute.xlu0 %336
      %340 = vset.pattern.permute.xlu0 0
      %341 = vperm.xlu0 %340, %v218
      %v342 = vpop.permute.xlu0 %341
      %345 = vset.pattern.permute.xlu0 0
      %346 = vperm.xlu0 %345, %v219
      %v347 = vpop.permute.xlu0 %346
      %350 = vset.pattern.permute.xlu0 0
      %351 = vperm.xlu0 %350, %v220
      %v352 = vpop.permute.xlu0 %351
      %355 = vset.pattern.permute.xlu0 0
      %356 = vperm.xlu0 %355, %v221
      %v357 = vpop.permute.xlu0 %356
      %360 = vset.pattern.permute.xlu0 0
      %361 = vperm.xlu0 %360, %v222
      %v362 = vpop.permute.xlu0 %361
      %365 = vset.pattern.permute.xlu0 0
      %366 = vperm.xlu0 %365, %v223
      %v367 = vpop.permute.xlu0 %366
      %370 = vset.pattern.permute.xlu0 0
      %371 = vperm.xlu0 %370, %v224
      %v372 = vpop.permute.xlu0 %371
      %375 = vset.pattern.permute.xlu0 0
      %376 = vperm.xlu0 %375, %v225
      %v377 = vpop.permute.xlu0 %376
      %380 = vset.pattern.permute.xlu0 0
      %381 = vperm.xlu0 %380, %v226
      %v382 = vpop.permute.xlu0 %381
      %385 = vset.pattern.permute.xlu0 0
      %386 = vperm.xlu0 %385, %v227
      %v387 = vpop.permute.xlu0 %386
      %v389 = vperm.slane %v228, 0
      %v390 = vmul.f32 %v232, %v389
      %v391 = vmul.f32 %v237, %v389
      %v392 = vmul.f32 %v242, %v389
      %v393 = vmul.f32 %v247, %v389
      %v394 = vmul.f32 %v252, %v389
      %v395 = vmul.f32 %v257, %v389
      %v396 = vmul.f32 %v262, %v389
      %v397 = vmul.f32 %v267, %v389
      %v398 = vmul.f32 %v272, %v389
      %v399 = vmul.f32 %v277, %v389
      %v400 = vmul.f32 %v282, %v389
      %v401 = vmul.f32 %v287, %v389
      %v402 = vmul.f32 %v292, %v389
      %v403 = vmul.f32 %v297, %v389
      %v404 = vmul.f32 %v302, %v389
      %v405 = vmul.f32 %v307, %v389
      %v406 = vmul.f32 %v312, %v389
      %v407 = vmul.f32 %v317, %v389
      %v408 = vmul.f32 %v322, %v389
      %v409 = vmul.f32 %v327, %v389
      %v410 = vmul.f32 %v332, %v389
      %v411 = vmul.f32 %v337, %v389
      %v412 = vmul.f32 %v342, %v389
      %v413 = vmul.f32 %v347, %v389
      %v414 = vmul.f32 %v352, %v389
      %v415 = vmul.f32 %v357, %v389
      %v416 = vmul.f32 %v362, %v389
      %v417 = vmul.f32 %v367, %v389
      %v418 = vmul.f32 %v372, %v389
      %v419 = vmul.f32 %v377, %v389
      %v420 = vmul.f32 %v382, %v389
      %v421 = vmul.f32 %v387, %v389
      %v422 = vadd.f32 %v390, 0.0
      %v423 = vadd.f32 %v391, 0.0
      %v424 = vadd.f32 %v392, 0.0
      %v425 = vadd.f32 %v393, 0.0
      %v426 = vadd.f32 %v394, 0.0
      %v427 = vadd.f32 %v395, 0.0
      %v428 = vadd.f32 %v396, 0.0
      %v429 = vadd.f32 %v397, 0.0
      %v430 = vadd.f32 %v398, 0.0
      %v431 = vadd.f32 %v399, 0.0
      %v432 = vadd.f32 %v400, 0.0
      %v433 = vadd.f32 %v401, 0.0
      %v434 = vadd.f32 %v402, 0.0
      %v435 = vadd.f32 %v403, 0.0
      %v436 = vadd.f32 %v404, 0.0
      %v437 = vadd.f32 %v405, 0.0
      %v438 = vadd.f32 %v406, 0.0
      %v439 = vadd.f32 %v407, 0.0
      %v440 = vadd.f32 %v408, 0.0
      %v441 = vadd.f32 %v409, 0.0
      %v442 = vadd.f32 %v410, 0.0
      %v443 = vadd.f32 %v411, 0.0
      %v444 = vadd.f32 %v412, 0.0
      %v445 = vadd.f32 %v413, 0.0
      %v446 = vadd.f32 %v414, 0.0
      %v447 = vadd.f32 %v415, 0.0
      %v448 = vadd.f32 %v416, 0.0
      %v449 = vadd.f32 %v417, 0.0
      %v450 = vadd.f32 %v418, 0.0
      %v451 = vadd.f32 %v419, 0.0
      %v452 = vadd.f32 %v420, 0.0
      %v453 = vadd.f32 %v421, 0.0
      %v454 = vld [vmem:[%s1 + $0x1] sm:$0x1]
      %455 = vset.pattern.permute.xlu0 1
      %456 = vperm.xlu0 %455, %v196
      %v457 = vpop.permute.xlu0 %456
      %459 = vset.pattern.permute.xlu0 1
      %460 = vperm.xlu0 %459, %v197
      %v461 = vpop.permute.xlu0 %460
      %463 = vset.pattern.permute.xlu0 1
      %464 = vperm.xlu0 %463, %v198
      %v465 = vpop.permute.xlu0 %464
      %467 = vset.pattern.permute.xlu0 1
      %468 = vperm.xlu0 %467, %v199
      %v469 = vpop.permute.xlu0 %468
      %471 = vset.pattern.permute.xlu0 1
      %472 = vperm.xlu0 %471, %v200
      %v473 = vpop.permute.xlu0 %472
      %475 = vset.pattern.permute.xlu0 1
      %476 = vperm.xlu0 %475, %v201
      %v477 = vpop.permute.xlu0 %476
      %479 = vset.pattern.permute.xlu0 1
      %480 = vperm.xlu0 %479, %v202
      %v481 = vpop.permute.xlu0 %480
      %483 = vset.pattern.permute.xlu0 1
      %484 = vperm.xlu0 %483, %v203
      %v485 = vpop.permute.xlu0 %484
      %487 = vset.pattern.permute.xlu0 1
      %488 = vperm.xlu0 %487, %v204
      %v489 = vpop.permute.xlu0 %488
      %491 = vset.pattern.permute.xlu0 1
      %492 = vperm.xlu0 %491, %v205
      %v493 = vpop.permute.xlu0 %492
      %495 = vset.pattern.permute.xlu0 1
      %496 = vperm.xlu0 %495, %v206
      %v497 = vpop.permute.xlu0 %496
      %499 = vset.pattern.permute.xlu0 1
      %500 = vperm.xlu0 %499, %v207
      %v501 = vpop.permute.xlu0 %500
      %503 = vset.pattern.permute.xlu0 1
      %504 = vperm.xlu0 %503, %v208
      %v505 = vpop.permute.xlu0 %504
      %507 = vset.pattern.permute.xlu0 1
      %508 = vperm.xlu0 %507, %v209
      %v509 = vpop.permute.xlu0 %508
      %511 = vset.pattern.permute.xlu0 1
      %512 = vperm.xlu0 %511, %v210
      %v513 = vpop.permute.xlu0 %512
      %515 = vset.pattern.permute.xlu0 1
      %516 = vperm.xlu0 %515, %v211
      %v517 = vpop.permute.xlu0 %516
      %519 = vset.pattern.permute.xlu0 1
      %520 = vperm.xlu0 %519, %v212
      %v521 = vpop.permute.xlu0 %520
      %523 = vset.pattern.permute.xlu0 1
      %524 = vperm.xlu0 %523, %v213
      %v525 = vpop.permute.xlu0 %524
      %527 = vset.pattern.permute.xlu0 1
      %528 = vperm.xlu0 %527, %v214
      %v529 = vpop.permute.xlu0 %528
      %531 = vset.pattern.permute.xlu0 1
      %532 = vperm.xlu0 %531, %v215
      %v533 = vpop.permute.xlu0 %532
      %535 = vset.pattern.permute.xlu0 1
      %536 = vperm.xlu0 %535, %v216
      %v537 = vpop.permute.xlu0 %536
      %539 = vset.pattern.permute.xlu0 1
      %540 = vperm.xlu0 %539, %v217
      %v541 = vpop.permute.xlu0 %540
      %543 = vset.pattern.permute.xlu0 1
      %544 = vperm.xlu0 %543, %v218
      %v545 = vpop.permute.xlu0 %544
      %547 = vset.pattern.permute.xlu0 1
      %548 = vperm.xlu0 %547, %v219
      %v549 = vpop.permute.xlu0 %548
      %551 = vset.pattern.permute.xlu0 1
      %552 = vperm.xlu0 %551, %v220
      %v553 = vpop.permute.xlu0 %552
      %555 = vset.pattern.permute.xlu0 1
      %556 = vperm.xlu0 %555, %v221
      %v557 = vpop.permute.xlu0 %556
      %559 = vset.pattern.permute.xlu0 1
      %560 = vperm.xlu0 %559, %v222
      %v561 = vpop.permute.xlu0 %560
      %563 = vset.pattern.permute.xlu0 1
      %564 = vperm.xlu0 %563, %v223
      %v565 = vpop.permute.xlu0 %564
      %567 = vset.pattern.permute.xlu0 1
      %568 = vperm.xlu0 %567, %v224
      %v569 = vpop.permute.xlu0 %568
      %571 = vset.pattern.permute.xlu0 1
      %572 = vperm.xlu0 %571, %v225
      %v573 = vpop.permute.xlu0 %572
      %575 = vset.pattern.permute.xlu0 1
      %576 = vperm.xlu0 %575, %v226
      %v577 = vpop.permute.xlu0 %576
      %579 = vset.pattern.permute.xlu0 1
      %580 = vperm.xlu0 %579, %v227
      %v581 = vpop.permute.xlu0 %580
      %v583 = vperm.slane %v454, 0
      %v584 = vmul.f32 %v457, %v583
      %v585 = vmul.f32 %v461, %v583
      %v586 = vmul.f32 %v465, %v583
      %v587 = vmul.f32 %v469, %v583
      %v588 = vmul.f32 %v473, %v583
      %v589 = vmul.f32 %v477, %v583
      %v590 = vmul.f32 %v481, %v583
      %v591 = vmul.f32 %v485, %v583
      %v592 = vmul.f32 %v489, %v583
      %v593 = vmul.f32 %v493, %v583
      %v594 = vmul.f32 %v497, %v583
      %v595 = vmul.f32 %v501, %v583
      %v596 = vmul.f32 %v505, %v583
      %v597 = vmul.f32 %v509, %v583
      %v598 = vmul.f32 %v513, %v583
      %v599 = vmul.f32 %v517, %v583
      %v600 = vmul.f32 %v521, %v583
      %v601 = vmul.f32 %v525, %v583
      %v602 = vmul.f32 %v529, %v583
      %v603 = vmul.f32 %v533, %v583
      %v604 = vmul.f32 %v537, %v583
      %v605 = vmul.f32 %v541, %v583
      %v606 = vmul.f32 %v545, %v583
      %v607 = vmul.f32 %v549, %v583
      %v608 = vmul.f32 %v553, %v583
      %v609 = vmul.f32 %v557, %v583
      %v610 = vmul.f32 %v561, %v583
      %v611 = vmul.f32 %v565, %v583
      %v612 = vmul.f32 %v569, %v583
      %v613 = vmul.f32 %v573, %v583
      %v614 = vmul.f32 %v577, %v583
      %v615 = vmul.f32 %v581, %v583
      %v616 = vadd.f32 %v422, %v584
      %v617 = vadd.f32 %v423, %v585
      %v618 = vadd.f32 %v424, %v586
      %v619 = vadd.f32 %v425, %v587
      %v620 = vadd.f32 %v426, %v588
      %v621 = vadd.f32 %v427, %v589
      %v622 = vadd.f32 %v428, %v590
      %v623 = vadd.f32 %v429, %v591
      %v624 = vadd.f32 %v430, %v592
      %v625 = vadd.f32 %v431, %v593
      %v626 = vadd.f32 %v432, %v594
      %v627 = vadd.f32 %v433, %v595
      %v628 = vadd.f32 %v434, %v596
      %v629 = vadd.f32 %v435, %v597
      %v630 = vadd.f32 %v436, %v598
      %v631 = vadd.f32 %v437, %v599
      %v632 = vadd.f32 %v438, %v600
      %v633 = vadd.f32 %v439, %v601
      %v634 = vadd.f32 %v440, %v602
      %v635 = vadd.f32 %v441, %v603
      %v636 = vadd.f32 %v442, %v604
      %v637 = vadd.f32 %v443, %v605
      %v638 = vadd.f32 %v444, %v606
      %v639 = vadd.f32 %v445, %v607
      %v640 = vadd.f32 %v446, %v608
      %v641 = vadd.f32 %v447, %v609
      %v642 = vadd.f32 %v448, %v610
      %v643 = vadd.f32 %v449, %v611
      %v644 = vadd.f32 %v450, %v612
      %v645 = vadd.f32 %v451, %v613
      %v646 = vadd.f32 %v452, %v614
      %v647 = vadd.f32 %v453, %v615
      %s648 = sadd.s32 %s194, 1
      %s649 = scalar_lea.vmem %s183, %s648
      %v650 = vld [vmem:[%s649] sm:$0xff]
      %v651 = vld [vmem:[%s649 + $0x8] sm:$0xff]
      %v652 = vld [vmem:[%s649 + $0x10] sm:$0xff]
      %v653 = vld [vmem:[%s649 + $0x18] sm:$0xff]
      %v654 = vld [vmem:[%s649 + $0x20] sm:$0xff]
      %v655 = vld [vmem:[%s649 + $0x28] sm:$0xff]
      %v656 = vld [vmem:[%s649 + $0x30] sm:$0xff]
      %v657 = vld [vmem:[%s649 + $0x38] sm:$0xff]
      %v658 = vld [vmem:[%s649 + $0x40] sm:$0xff]
      %v659 = vld [vmem:[%s649 + $0x48] sm:$0xff]
      %v660 = vld [vmem:[%s649 + $0x50] sm:$0xff]
      %v661 = vld [vmem:[%s649 + $0x58] sm:$0xff]
      %v662 = vld [vmem:[%s649 + $0x60] sm:$0xff]
      %v663 = vld [vmem:[%s649 + $0x68] sm:$0xff]
      %v664 = vld [vmem:[%s649 + $0x70] sm:$0xff]
      %v665 = vld [vmem:[%s649 + $0x78] sm:$0xff]
      %v666 = vld [vmem:[%s649 + $0x80] sm:$0xff]
      %v667 = vld [vmem:[%s649 + $0x88] sm:$0xff]
      %v668 = vld [vmem:[%s649 + $0x90] sm:$0xff]
      %v669 = vld [vmem:[%s649 + $0x98] sm:$0xff]
      %v670 = vld [vmem:[%s649 + $0xa0] sm:$0xff]
      %v671 = vld [vmem:[%s649 + $0xa8] sm:$0xff]
      %v672 = vld [vmem:[%s649 + $0xb0] sm:$0xff]
      %v673 = vld [vmem:[%s649 + $0xb8] sm:$0xff]
      %v674 = vld [vmem:[%s649 + $0xc0] sm:$0xff]
      %v675 = vld [vmem:[%s649 + $0xc8] sm:$0xff]
      %v676 = vld [vmem:[%s649 + $0xd0] sm:$0xff]
      %v677 = vld [vmem:[%s649 + $0xd8] sm:$0xff]
      %v678 = vld [vmem:[%s649 + $0xe0] sm:$0xff]
      %v679 = vld [vmem:[%s649 + $0xe8] sm:$0xff]
      %v680 = vld [vmem:[%s649 + $0xf0] sm:$0xff]
      %v681 = vld [vmem:[%s649 + $0xf8] sm:$0xff]
      %s682 = scalar_lea.vmem %s1, 2
      %v683 = vld [vmem:[%s682] sm:$0x1]
      %685 = vset.pattern.permute.xlu0 0
      %686 = vperm.xlu0 %685, %v650
      %v687 = vpop.permute.xlu0 %686
      %690 = vset.pattern.permute.xlu0 0
      %691 = vperm.xlu0 %690, %v651
      %v692 = vpop.permute.xlu0 %691
      %695 = vset.pattern.permute.xlu0 0
      %696 = vperm.xlu0 %695, %v652
      %v697 = vpop.permute.xlu0 %696
      %700 = vset.pattern.permute.xlu0 0
      %701 = vperm.xlu0 %700, %v653
      %v702 = vpop.permute.xlu0 %701
      %705 = vset.pattern.permute.xlu0 0
      %706 = vperm.xlu0 %705, %v654
      %v707 = vpop.permute.xlu0 %706
      %710 = vset.pattern.permute.xlu0 0
      %711 = vperm.xlu0 %710, %v655
      %v712 = vpop.permute.xlu0 %711
      %715 = vset.pattern.permute.xlu0 0
      %716 = vperm.xlu0 %715, %v656
      %v717 = vpop.permute.xlu0 %716
      %720 = vset.pattern.permute.xlu0 0
      %721 = vperm.xlu0 %720, %v657
      %v722 = vpop.permute.xlu0 %721
      %725 = vset.pattern.permute.xlu0 0
      %726 = vperm.xlu0 %725, %v658
      %v727 = vpop.permute.xlu0 %726
      %730 = vset.pattern.permute.xlu0 0
      %731 = vperm.xlu0 %730, %v659
      %v732 = vpop.permute.xlu0 %731
      %735 = vset.pattern.permute.xlu0 0
      %736 = vperm.xlu0 %735, %v660
      %v737 = vpop.permute.xlu0 %736
      %740 = vset.pattern.permute.xlu0 0
      %741 = vperm.xlu0 %740, %v661
      %v742 = vpop.permute.xlu0 %741
      %745 = vset.pattern.permute.xlu0 0
      %746 = vperm.xlu0 %745, %v662
      %v747 = vpop.permute.xlu0 %746
      %750 = vset.pattern.permute.xlu0 0
      %751 = vperm.xlu0 %750, %v663
      %v752 = vpop.permute.xlu0 %751
      %755 = vset.pattern.permute.xlu0 0
      %756 = vperm.xlu0 %755, %v664
      %v757 = vpop.permute.xlu0 %756
      %760 = vset.pattern.permute.xlu0 0
      %761 = vperm.xlu0 %760, %v665
      %v762 = vpop.permute.xlu0 %761
      %765 = vset.pattern.permute.xlu0 0
      %766 = vperm.xlu0 %765, %v666
      %v767 = vpop.permute.xlu0 %766
      %770 = vset.pattern.permute.xlu0 0
      %771 = vperm.xlu0 %770, %v667
      %v772 = vpop.permute.xlu0 %771
      %775 = vset.pattern.permute.xlu0 0
      %776 = vperm.xlu0 %775, %v668
      %v777 = vpop.permute.xlu0 %776
      %780 = vset.pattern.permute.xlu0 0
      %781 = vperm.xlu0 %780, %v669
      %v782 = vpop.permute.xlu0 %781
      %785 = vset.pattern.permute.xlu0 0
      %786 = vperm.xlu0 %785, %v670
      %v787 = vpop.permute.xlu0 %786
      %790 = vset.pattern.permute.xlu0 0
      %791 = vperm.xlu0 %790, %v671
      %v792 = vpop.permute.xlu0 %791
      %795 = vset.pattern.permute.xlu0 0
      %796 = vperm.xlu0 %795, %v672
      %v797 = vpop.permute.xlu0 %796
      %800 = vset.pattern.permute.xlu0 0
      %801 = vperm.xlu0 %800, %v673
      %v802 = vpop.permute.xlu0 %801
      %805 = vset.pattern.permute.xlu0 0
      %806 = vperm.xlu0 %805, %v674
      %v807 = vpop.permute.xlu0 %806
      %810 = vset.pattern.permute.xlu0 0
      %811 = vperm.xlu0 %810, %v675
      %v812 = vpop.permute.xlu0 %811
      %815 = vset.pattern.permute.xlu0 0
      %816 = vperm.xlu0 %815, %v676
      %v817 = vpop.permute.xlu0 %816
      %820 = vset.pattern.permute.xlu0 0
      %821 = vperm.xlu0 %820, %v677
      %v822 = vpop.permute.xlu0 %821
      %825 = vset.pattern.permute.xlu0 0
      %826 = vperm.xlu0 %825, %v678
      %v827 = vpop.permute.xlu0 %826
      %830 = vset.pattern.permute.xlu0 0
      %831 = vperm.xlu0 %830, %v679
      %v832 = vpop.permute.xlu0 %831
      %835 = vset.pattern.permute.xlu0 0
      %836 = vperm.xlu0 %835, %v680
      %v837 = vpop.permute.xlu0 %836
      %840 = vset.pattern.permute.xlu0 0
      %841 = vperm.xlu0 %840, %v681
      %v842 = vpop.permute.xlu0 %841
      %v844 = vperm.slane %v683, 0
      %v845 = vmul.f32 %v687, %v844
      %v846 = vmul.f32 %v692, %v844
      %v847 = vmul.f32 %v697, %v844
      %v848 = vmul.f32 %v702, %v844
      %v849 = vmul.f32 %v707, %v844
      %v850 = vmul.f32 %v712, %v844
      %v851 = vmul.f32 %v717, %v844
      %v852 = vmul.f32 %v722, %v844
      %v853 = vmul.f32 %v727, %v844
      %v854 = vmul.f32 %v732, %v844
      %v855 = vmul.f32 %v737, %v844
      %v856 = vmul.f32 %v742, %v844
      %v857 = vmul.f32 %v747, %v844
      %v858 = vmul.f32 %v752, %v844
      %v859 = vmul.f32 %v757, %v844
      %v860 = vmul.f32 %v762, %v844
      %v861 = vmul.f32 %v767, %v844
      %v862 = vmul.f32 %v772, %v844
      %v863 = vmul.f32 %v777, %v844
      %v864 = vmul.f32 %v782, %v844
      %v865 = vmul.f32 %v787, %v844
      %v866 = vmul.f32 %v792, %v844
      %v867 = vmul.f32 %v797, %v844
      %v868 = vmul.f32 %v802, %v844
      %v869 = vmul.f32 %v807, %v844
      %v870 = vmul.f32 %v812, %v844
      %v871 = vmul.f32 %v817, %v844
      %v872 = vmul.f32 %v822, %v844
      %v873 = vmul.f32 %v827, %v844
      %v874 = vmul.f32 %v832, %v844
      %v875 = vmul.f32 %v837, %v844
      %v876 = vmul.f32 %v842, %v844
      %v877 = vadd.f32 %v616, %v845
      %v878 = vadd.f32 %v617, %v846
      %v879 = vadd.f32 %v618, %v847
      %v880 = vadd.f32 %v619, %v848
      %v881 = vadd.f32 %v620, %v849
      %v882 = vadd.f32 %v621, %v850
      %v883 = vadd.f32 %v622, %v851
      %v884 = vadd.f32 %v623, %v852
      %v885 = vadd.f32 %v624, %v853
      %v886 = vadd.f32 %v625, %v854
      %v887 = vadd.f32 %v626, %v855
      %v888 = vadd.f32 %v627, %v856
      %v889 = vadd.f32 %v628, %v857
      %v890 = vadd.f32 %v629, %v858
      %v891 = vadd.f32 %v630, %v859
      %v892 = vadd.f32 %v631, %v860
      %v893 = vadd.f32 %v632, %v861
      %v894 = vadd.f32 %v633, %v862
      %v895 = vadd.f32 %v634, %v863
      %v896 = vadd.f32 %v635, %v864
      %v897 = vadd.f32 %v636, %v865
      %v898 = vadd.f32 %v637, %v866
      %v899 = vadd.f32 %v638, %v867
      %v900 = vadd.f32 %v639, %v868
      %v901 = vadd.f32 %v640, %v869
      %v902 = vadd.f32 %v641, %v870
      %v903 = vadd.f32 %v642, %v871
      %v904 = vadd.f32 %v643, %v872
      %v905 = vadd.f32 %v644, %v873
      %v906 = vadd.f32 %v645, %v874
      %v907 = vadd.f32 %v646, %v875
      %v908 = vadd.f32 %v647, %v876
      %v909 = vld [vmem:[%s682 + $0x1] sm:$0x1]
      %910 = vset.pattern.permute.xlu0 1
      %911 = vperm.xlu0 %910, %v650
      %v912 = vpop.permute.xlu0 %911
      %914 = vset.pattern.permute.xlu0 1
      %915 = vperm.xlu0 %914, %v651
      %v916 = vpop.permute.xlu0 %915
      %918 = vset.pattern.permute.xlu0 1
      %919 = vperm.xlu0 %918, %v652
      %v920 = vpop.permute.xlu0 %919
      %922 = vset.pattern.permute.xlu0 1
      %923 = vperm.xlu0 %922, %v653
      %v924 = vpop.permute.xlu0 %923
      %926 = vset.pattern.permute.xlu0 1
      %927 = vperm.xlu0 %926, %v654
      %v928 = vpop.permute.xlu0 %927
      %930 = vset.pattern.permute.xlu0 1
      %931 = vperm.xlu0 %930, %v655
      %v932 = vpop.permute.xlu0 %931
      %934 = vset.pattern.permute.xlu0 1
      %935 = vperm.xlu0 %934, %v656
      %v936 = vpop.permute.xlu0 %935
      %938 = vset.pattern.permute.xlu0 1
      %939 = vperm.xlu0 %938, %v657
      %v940 = vpop.permute.xlu0 %939
      %942 = vset.pattern.permute.xlu0 1
      %943 = vperm.xlu0 %942, %v658
      %v944 = vpop.permute.xlu0 %943
      %946 = vset.pattern.permute.xlu0 1
      %947 = vperm.xlu0 %946, %v659
      %v948 = vpop.permute.xlu0 %947
      %950 = vset.pattern.permute.xlu0 1
      %951 = vperm.xlu0 %950, %v660
      %v952 = vpop.permute.xlu0 %951
      %954 = vset.pattern.permute.xlu0 1
      %955 = vperm.xlu0 %954, %v661
      %v956 = vpop.permute.xlu0 %955
      %958 = vset.pattern.permute.xlu0 1
      %959 = vperm.xlu0 %958, %v662
      %v960 = vpop.permute.xlu0 %959
      %962 = vset.pattern.permute.xlu0 1
      %963 = vperm.xlu0 %962, %v663
      %v964 = vpop.permute.xlu0 %963
      %966 = vset.pattern.permute.xlu0 1
      %967 = vperm.xlu0 %966, %v664
      %v968 = vpop.permute.xlu0 %967
      %970 = vset.pattern.permute.xlu0 1
      %971 = vperm.xlu0 %970, %v665
      %v972 = vpop.permute.xlu0 %971
      %974 = vset.pattern.permute.xlu0 1
      %975 = vperm.xlu0 %974, %v666
      %v976 = vpop.permute.xlu0 %975
      %978 = vset.pattern.permute.xlu0 1
      %979 = vperm.xlu0 %978, %v667
      %v980 = vpop.permute.xlu0 %979
      %982 = vset.pattern.permute.xlu0 1
      %983 = vperm.xlu0 %982, %v668
      %v984 = vpop.permute.xlu0 %983
      %986 = vset.pattern.permute.xlu0 1
      %987 = vperm.xlu0 %986, %v669
      %v988 = vpop.permute.xlu0 %987
      %990 = vset.pattern.permute.xlu0 1
      %991 = vperm.xlu0 %990, %v670
      %v992 = vpop.permute.xlu0 %991
      %994 = vset.pattern.permute.xlu0 1
      %995 = vperm.xlu0 %994, %v671
      %v996 = vpop.permute.xlu0 %995
      %998 = vset.pattern.permute.xlu0 1
      %999 = vperm.xlu0 %998, %v672
      %v1000 = vpop.permute.xlu0 %999
      %1002 = vset.pattern.permute.xlu0 1
      %1003 = vperm.xlu0 %1002, %v673
      %v1004 = vpop.permute.xlu0 %1003
      %1006 = vset.pattern.permute.xlu0 1
      %1007 = vperm.xlu0 %1006, %v674
      %v1008 = vpop.permute.xlu0 %1007
      %1010 = vset.pattern.permute.xlu0 1
      %1011 = vperm.xlu0 %1010, %v675
      %v1012 = vpop.permute.xlu0 %1011
      %1014 = vset.pattern.permute.xlu0 1
      %1015 = vperm.xlu0 %1014, %v676
      %v1016 = vpop.permute.xlu0 %1015
      %1018 = vset.pattern.permute.xlu0 1
      %1019 = vperm.xlu0 %1018, %v677
      %v1020 = vpop.permute.xlu0 %1019
      %1022 = vset.pattern.permute.xlu0 1
      %1023 = vperm.xlu0 %1022, %v678
      %v1024 = vpop.permute.xlu0 %1023
      %1026 = vset.pattern.permute.xlu0 1
      %1027 = vperm.xlu0 %1026, %v679
      %v1028 = vpop.permute.xlu0 %1027
      %1030 = vset.pattern.permute.xlu0 1
      %1031 = vperm.xlu0 %1030, %v680
      %v1032 = vpop.permute.xlu0 %1031
      %1034 = vset.pattern.permute.xlu0 1
      %1035 = vperm.xlu0 %1034, %v681
      %v1036 = vpop.permute.xlu0 %1035
      %v1038 = vperm.slane %v909, 0
      %v1039 = vmul.f32 %v912, %v1038
      %v1040 = vmul.f32 %v916, %v1038
      %v1041 = vmul.f32 %v920, %v1038
      %v1042 = vmul.f32 %v924, %v1038
      %v1043 = vmul.f32 %v928, %v1038
      %v1044 = vmul.f32 %v932, %v1038
      %v1045 = vmul.f32 %v936, %v1038
      %v1046 = vmul.f32 %v940, %v1038
      %v1047 = vmul.f32 %v944, %v1038
      %v1048 = vmul.f32 %v948, %v1038
      %v1049 = vmul.f32 %v952, %v1038
      %v1050 = vmul.f32 %v956, %v1038
      %v1051 = vmul.f32 %v960, %v1038
      %v1052 = vmul.f32 %v964, %v1038
      %v1053 = vmul.f32 %v968, %v1038
      %v1054 = vmul.f32 %v972, %v1038
      %v1055 = vmul.f32 %v976, %v1038
      %v1056 = vmul.f32 %v980, %v1038
      %v1057 = vmul.f32 %v984, %v1038
      %v1058 = vmul.f32 %v988, %v1038
      %v1059 = vmul.f32 %v992, %v1038
      %v1060 = vmul.f32 %v996, %v1038
      %v1061 = vmul.f32 %v1000, %v1038
      %v1062 = vmul.f32 %v1004, %v1038
      %v1063 = vmul.f32 %v1008, %v1038
      %v1064 = vmul.f32 %v1012, %v1038
      %v1065 = vmul.f32 %v1016, %v1038
      %v1066 = vmul.f32 %v1020, %v1038
      %v1067 = vmul.f32 %v1024, %v1038
      %v1068 = vmul.f32 %v1028, %v1038
      %v1069 = vmul.f32 %v1032, %v1038
      %v1070 = vmul.f32 %v1036, %v1038
      %v1071 = vadd.f32 %v877, %v1039
      %v1072 = vadd.f32 %v878, %v1040
      %v1073 = vadd.f32 %v879, %v1041
      %v1074 = vadd.f32 %v880, %v1042
      %v1075 = vadd.f32 %v881, %v1043
      %v1076 = vadd.f32 %v882, %v1044
      %v1077 = vadd.f32 %v883, %v1045
      %v1078 = vadd.f32 %v884, %v1046
      %v1079 = vadd.f32 %v885, %v1047
      %v1080 = vadd.f32 %v886, %v1048
      %v1081 = vadd.f32 %v887, %v1049
      %v1082 = vadd.f32 %v888, %v1050
      %v1083 = vadd.f32 %v889, %v1051
      %v1084 = vadd.f32 %v890, %v1052
      %v1085 = vadd.f32 %v891, %v1053
      %v1086 = vadd.f32 %v892, %v1054
      %v1087 = vadd.f32 %v893, %v1055
      %v1088 = vadd.f32 %v894, %v1056
      %v1089 = vadd.f32 %v895, %v1057
      %v1090 = vadd.f32 %v896, %v1058
      %v1091 = vadd.f32 %v897, %v1059
      %v1092 = vadd.f32 %v898, %v1060
      %v1093 = vadd.f32 %v899, %v1061
      %v1094 = vadd.f32 %v900, %v1062
      %v1095 = vadd.f32 %v901, %v1063
      %v1096 = vadd.f32 %v902, %v1064
      %v1097 = vadd.f32 %v903, %v1065
      %v1098 = vadd.f32 %v904, %v1066
      %v1099 = vadd.f32 %v905, %v1067
      %v1100 = vadd.f32 %v906, %v1068
      %v1101 = vadd.f32 %v907, %v1069
      %v1102 = vadd.f32 %v908, %v1070
      %s1103 = sadd.s32 %s194, 2
      %s1104 = scalar_lea.vmem %s183, %s1103
      %v1105 = vld [vmem:[%s1104] sm:$0xff]
      %v1106 = vld [vmem:[%s1104 + $0x8] sm:$0xff]
      %v1107 = vld [vmem:[%s1104 + $0x10] sm:$0xff]
      %v1108 = vld [vmem:[%s1104 + $0x18] sm:$0xff]
      %v1109 = vld [vmem:[%s1104 + $0x20] sm:$0xff]
      %v1110 = vld [vmem:[%s1104 + $0x28] sm:$0xff]
      %v1111 = vld [vmem:[%s1104 + $0x30] sm:$0xff]
      %v1112 = vld [vmem:[%s1104 + $0x38] sm:$0xff]
      %v1113 = vld [vmem:[%s1104 + $0x40] sm:$0xff]
      %v1114 = vld [vmem:[%s1104 + $0x48] sm:$0xff]
      %v1115 = vld [vmem:[%s1104 + $0x50] sm:$0xff]
      %v1116 = vld [vmem:[%s1104 + $0x58] sm:$0xff]
      %v1117 = vld [vmem:[%s1104 + $0x60] sm:$0xff]
      %v1118 = vld [vmem:[%s1104 + $0x68] sm:$0xff]
      %v1119 = vld [vmem:[%s1104 + $0x70] sm:$0xff]
      %v1120 = vld [vmem:[%s1104 + $0x78] sm:$0xff]
      %v1121 = vld [vmem:[%s1104 + $0x80] sm:$0xff]
      %v1122 = vld [vmem:[%s1104 + $0x88] sm:$0xff]
      %v1123 = vld [vmem:[%s1104 + $0x90] sm:$0xff]
      %v1124 = vld [vmem:[%s1104 + $0x98] sm:$0xff]
      %v1125 = vld [vmem:[%s1104 + $0xa0] sm:$0xff]
      %v1126 = vld [vmem:[%s1104 + $0xa8] sm:$0xff]
      %v1127 = vld [vmem:[%s1104 + $0xb0] sm:$0xff]
      %v1128 = vld [vmem:[%s1104 + $0xb8] sm:$0xff]
      %v1129 = vld [vmem:[%s1104 + $0xc0] sm:$0xff]
      %v1130 = vld [vmem:[%s1104 + $0xc8] sm:$0xff]
      %v1131 = vld [vmem:[%s1104 + $0xd0] sm:$0xff]
      %v1132 = vld [vmem:[%s1104 + $0xd8] sm:$0xff]
      %v1133 = vld [vmem:[%s1104 + $0xe0] sm:$0xff]
      %v1134 = vld [vmem:[%s1104 + $0xe8] sm:$0xff]
      %v1135 = vld [vmem:[%s1104 + $0xf0] sm:$0xff]
      %v1136 = vld [vmem:[%s1104 + $0xf8] sm:$0xff]
      %s1137 = scalar_lea.vmem %s1, 4
      %v1138 = vld [vmem:[%s1137] sm:$0x1]
      %1140 = vset.pattern.permute.xlu0 0
      %1141 = vperm.xlu0 %1140, %v1105
      %v1142 = vpop.permute.xlu0 %1141
      %1145 = vset.pattern.permute.xlu0 0
      %1146 = vperm.xlu0 %1145, %v1106
      %v1147 = vpop.permute.xlu0 %1146
      %1150 = vset.pattern.permute.xlu0 0
      %1151 = vperm.xlu0 %1150, %v1107
      %v1152 = vpop.permute.xlu0 %1151
      %1155 = vset.pattern.permute.xlu0 0
      %1156 = vperm.xlu0 %1155, %v1108
      %v1157 = vpop.permute.xlu0 %1156
      %1160 = vset.pattern.permute.xlu0 0
      %1161 = vperm.xlu0 %1160, %v1109
      %v1162 = vpop.permute.xlu0 %1161
      %1165 = vset.pattern.permute.xlu0 0
      %1166 = vperm.xlu0 %1165, %v1110
      %v1167 = vpop.permute.xlu0 %1166
      %1170 = vset.pattern.permute.xlu0 0
      %1171 = vperm.xlu0 %1170, %v1111
      %v1172 = vpop.permute.xlu0 %1171
      %1175 = vset.pattern.permute.xlu0 0
      %1176 = vperm.xlu0 %1175, %v1112
      %v1177 = vpop.permute.xlu0 %1176
      %1180 = vset.pattern.permute.xlu0 0
      %1181 = vperm.xlu0 %1180, %v1113
      %v1182 = vpop.permute.xlu0 %1181
      %1185 = vset.pattern.permute.xlu0 0
      %1186 = vperm.xlu0 %1185, %v1114
      %v1187 = vpop.permute.xlu0 %1186
      %1190 = vset.pattern.permute.xlu0 0
      %1191 = vperm.xlu0 %1190, %v1115
      %v1192 = vpop.permute.xlu0 %1191
      %1195 = vset.pattern.permute.xlu0 0
      %1196 = vperm.xlu0 %1195, %v1116
      %v1197 = vpop.permute.xlu0 %1196
      %1200 = vset.pattern.permute.xlu0 0
      %1201 = vperm.xlu0 %1200, %v1117
      %v1202 = vpop.permute.xlu0 %1201
      %1205 = vset.pattern.permute.xlu0 0
      %1206 = vperm.xlu0 %1205, %v1118
      %v1207 = vpop.permute.xlu0 %1206
      %1210 = vset.pattern.permute.xlu0 0
      %1211 = vperm.xlu0 %1210, %v1119
      %v1212 = vpop.permute.xlu0 %1211
      %1215 = vset.pattern.permute.xlu0 0
      %1216 = vperm.xlu0 %1215, %v1120
      %v1217 = vpop.permute.xlu0 %1216
      %1220 = vset.pattern.permute.xlu0 0
      %1221 = vperm.xlu0 %1220, %v1121
      %v1222 = vpop.permute.xlu0 %1221
      %1225 = vset.pattern.permute.xlu0 0
      %1226 = vperm.xlu0 %1225, %v1122
      %v1227 = vpop.permute.xlu0 %1226
      %1230 = vset.pattern.permute.xlu0 0
      %1231 = vperm.xlu0 %1230, %v1123
      %v1232 = vpop.permute.xlu0 %1231
      %1235 = vset.pattern.permute.xlu0 0
      %1236 = vperm.xlu0 %1235, %v1124
      %v1237 = vpop.permute.xlu0 %1236
      %1240 = vset.pattern.permute.xlu0 0
      %1241 = vperm.xlu0 %1240, %v1125
      %v1242 = vpop.permute.xlu0 %1241
      %1245 = vset.pattern.permute.xlu0 0
      %1246 = vperm.xlu0 %1245, %v1126
      %v1247 = vpop.permute.xlu0 %1246
      %1250 = vset.pattern.permute.xlu0 0
      %1251 = vperm.xlu0 %1250, %v1127
      %v1252 = vpop.permute.xlu0 %1251
      %1255 = vset.pattern.permute.xlu0 0
      %1256 = vperm.xlu0 %1255, %v1128
      %v1257 = vpop.permute.xlu0 %1256
      %1260 = vset.pattern.permute.xlu0 0
      %1261 = vperm.xlu0 %1260, %v1129
      %v1262 = vpop.permute.xlu0 %1261
      %1265 = vset.pattern.permute.xlu0 0
      %1266 = vperm.xlu0 %1265, %v1130
      %v1267 = vpop.permute.xlu0 %1266
      %1270 = vset.pattern.permute.xlu0 0
      %1271 = vperm.xlu0 %1270, %v1131
      %v1272 = vpop.permute.xlu0 %1271
      %1275 = vset.pattern.permute.xlu0 0
      %1276 = vperm.xlu0 %1275, %v1132
      %v1277 = vpop.permute.xlu0 %1276
      %1280 = vset.pattern.permute.xlu0 0
      %1281 = vperm.xlu0 %1280, %v1133
      %v1282 = vpop.permute.xlu0 %1281
      %1285 = vset.pattern.permute.xlu0 0
      %1286 = vperm.xlu0 %1285, %v1134
      %v1287 = vpop.permute.xlu0 %1286
      %1290 = vset.pattern.permute.xlu0 0
      %1291 = vperm.xlu0 %1290, %v1135
      %v1292 = vpop.permute.xlu0 %1291
      %1295 = vset.pattern.permute.xlu0 0
      %1296 = vperm.xlu0 %1295, %v1136
      %v1297 = vpop.permute.xlu0 %1296
      %v1299 = vperm.slane %v1138, 0
      %v1300 = vmul.f32 %v1142, %v1299
      %v1301 = vmul.f32 %v1147, %v1299
      %v1302 = vmul.f32 %v1152, %v1299
      %v1303 = vmul.f32 %v1157, %v1299
      %v1304 = vmul.f32 %v1162, %v1299
      %v1305 = vmul.f32 %v1167, %v1299
      %v1306 = vmul.f32 %v1172, %v1299
      %v1307 = vmul.f32 %v1177, %v1299
      %v1308 = vmul.f32 %v1182, %v1299
      %v1309 = vmul.f32 %v1187, %v1299
      %v1310 = vmul.f32 %v1192, %v1299
      %v1311 = vmul.f32 %v1197, %v1299
      %v1312 = vmul.f32 %v1202, %v1299
      %v1313 = vmul.f32 %v1207, %v1299
      %v1314 = vmul.f32 %v1212, %v1299
      %v1315 = vmul.f32 %v1217, %v1299
      %v1316 = vmul.f32 %v1222, %v1299
      %v1317 = vmul.f32 %v1227, %v1299
      %v1318 = vmul.f32 %v1232, %v1299
      %v1319 = vmul.f32 %v1237, %v1299
      %v1320 = vmul.f32 %v1242, %v1299
      %v1321 = vmul.f32 %v1247, %v1299
      %v1322 = vmul.f32 %v1252, %v1299
      %v1323 = vmul.f32 %v1257, %v1299
      %v1324 = vmul.f32 %v1262, %v1299
      %v1325 = vmul.f32 %v1267, %v1299
      %v1326 = vmul.f32 %v1272, %v1299
      %v1327 = vmul.f32 %v1277, %v1299
      %v1328 = vmul.f32 %v1282, %v1299
      %v1329 = vmul.f32 %v1287, %v1299
      %v1330 = vmul.f32 %v1292, %v1299
      %v1331 = vmul.f32 %v1297, %v1299
      %v1332 = vadd.f32 %v1071, %v1300
      %v1333 = vadd.f32 %v1072, %v1301
      %v1334 = vadd.f32 %v1073, %v1302
      %v1335 = vadd.f32 %v1074, %v1303
      %v1336 = vadd.f32 %v1075, %v1304
      %v1337 = vadd.f32 %v1076, %v1305
      %v1338 = vadd.f32 %v1077, %v1306
      %v1339 = vadd.f32 %v1078, %v1307
      %v1340 = vadd.f32 %v1079, %v1308
      %v1341 = vadd.f32 %v1080, %v1309
      %v1342 = vadd.f32 %v1081, %v1310
      %v1343 = vadd.f32 %v1082, %v1311
      %v1344 = vadd.f32 %v1083, %v1312
      %v1345 = vadd.f32 %v1084, %v1313
      %v1346 = vadd.f32 %v1085, %v1314
      %v1347 = vadd.f32 %v1086, %v1315
      %v1348 = vadd.f32 %v1087, %v1316
      %v1349 = vadd.f32 %v1088, %v1317
      %v1350 = vadd.f32 %v1089, %v1318
      %v1351 = vadd.f32 %v1090, %v1319
      %v1352 = vadd.f32 %v1091, %v1320
      %v1353 = vadd.f32 %v1092, %v1321
      %v1354 = vadd.f32 %v1093, %v1322
      %v1355 = vadd.f32 %v1094, %v1323
      %v1356 = vadd.f32 %v1095, %v1324
      %v1357 = vadd.f32 %v1096, %v1325
      %v1358 = vadd.f32 %v1097, %v1326
      %v1359 = vadd.f32 %v1098, %v1327
      %v1360 = vadd.f32 %v1099, %v1328
      %v1361 = vadd.f32 %v1100, %v1329
      %v1362 = vadd.f32 %v1101, %v1330
      %v1363 = vadd.f32 %v1102, %v1331
      %v1364 = vld [vmem:[%s1137 + $0x1] sm:$0x1]
      %1365 = vset.pattern.permute.xlu0 1
      %1366 = vperm.xlu0 %1365, %v1105
      %v1367 = vpop.permute.xlu0 %1366
      %1369 = vset.pattern.permute.xlu0 1
      %1370 = vperm.xlu0 %1369, %v1106
      %v1371 = vpop.permute.xlu0 %1370
      %1373 = vset.pattern.permute.xlu0 1
      %1374 = vperm.xlu0 %1373, %v1107
      %v1375 = vpop.permute.xlu0 %1374
      %1377 = vset.pattern.permute.xlu0 1
      %1378 = vperm.xlu0 %1377, %v1108
      %v1379 = vpop.permute.xlu0 %1378
      %1381 = vset.pattern.permute.xlu0 1
      %1382 = vperm.xlu0 %1381, %v1109
      %v1383 = vpop.permute.xlu0 %1382
      %1385 = vset.pattern.permute.xlu0 1
      %1386 = vperm.xlu0 %1385, %v1110
      %v1387 = vpop.permute.xlu0 %1386
      %1389 = vset.pattern.permute.xlu0 1
      %1390 = vperm.xlu0 %1389, %v1111
      %v1391 = vpop.permute.xlu0 %1390
      %1393 = vset.pattern.permute.xlu0 1
      %1394 = vperm.xlu0 %1393, %v1112
      %v1395 = vpop.permute.xlu0 %1394
      %1397 = vset.pattern.permute.xlu0 1
      %1398 = vperm.xlu0 %1397, %v1113
      %v1399 = vpop.permute.xlu0 %1398
      %1401 = vset.pattern.permute.xlu0 1
      %1402 = vperm.xlu0 %1401, %v1114
      %v1403 = vpop.permute.xlu0 %1402
      %1405 = vset.pattern.permute.xlu0 1
      %1406 = vperm.xlu0 %1405, %v1115
      %v1407 = vpop.permute.xlu0 %1406
      %1409 = vset.pattern.permute.xlu0 1
      %1410 = vperm.xlu0 %1409, %v1116
      %v1411 = vpop.permute.xlu0 %1410
      %1413 = vset.pattern.permute.xlu0 1
      %1414 = vperm.xlu0 %1413, %v1117
      %v1415 = vpop.permute.xlu0 %1414
      %1417 = vset.pattern.permute.xlu0 1
      %1418 = vperm.xlu0 %1417, %v1118
      %v1419 = vpop.permute.xlu0 %1418
      %1421 = vset.pattern.permute.xlu0 1
      %1422 = vperm.xlu0 %1421, %v1119
      %v1423 = vpop.permute.xlu0 %1422
      %1425 = vset.pattern.permute.xlu0 1
      %1426 = vperm.xlu0 %1425, %v1120
      %v1427 = vpop.permute.xlu0 %1426
      %1429 = vset.pattern.permute.xlu0 1
      %1430 = vperm.xlu0 %1429, %v1121
      %v1431 = vpop.permute.xlu0 %1430
      %1433 = vset.pattern.permute.xlu0 1
      %1434 = vperm.xlu0 %1433, %v1122
      %v1435 = vpop.permute.xlu0 %1434
      %1437 = vset.pattern.permute.xlu0 1
      %1438 = vperm.xlu0 %1437, %v1123
      %v1439 = vpop.permute.xlu0 %1438
      %1441 = vset.pattern.permute.xlu0 1
      %1442 = vperm.xlu0 %1441, %v1124
      %v1443 = vpop.permute.xlu0 %1442
      %1445 = vset.pattern.permute.xlu0 1
      %1446 = vperm.xlu0 %1445, %v1125
      %v1447 = vpop.permute.xlu0 %1446
      %1449 = vset.pattern.permute.xlu0 1
      %1450 = vperm.xlu0 %1449, %v1126
      %v1451 = vpop.permute.xlu0 %1450
      %1453 = vset.pattern.permute.xlu0 1
      %1454 = vperm.xlu0 %1453, %v1127
      %v1455 = vpop.permute.xlu0 %1454
      %1457 = vset.pattern.permute.xlu0 1
      %1458 = vperm.xlu0 %1457, %v1128
      %v1459 = vpop.permute.xlu0 %1458
      %1461 = vset.pattern.permute.xlu0 1
      %1462 = vperm.xlu0 %1461, %v1129
      %v1463 = vpop.permute.xlu0 %1462
      %1465 = vset.pattern.permute.xlu0 1
      %1466 = vperm.xlu0 %1465, %v1130
      %v1467 = vpop.permute.xlu0 %1466
      %1469 = vset.pattern.permute.xlu0 1
      %1470 = vperm.xlu0 %1469, %v1131
      %v1471 = vpop.permute.xlu0 %1470
      %1473 = vset.pattern.permute.xlu0 1
      %1474 = vperm.xlu0 %1473, %v1132
      %v1475 = vpop.permute.xlu0 %1474
      %1477 = vset.pattern.permute.xlu0 1
      %1478 = vperm.xlu0 %1477, %v1133
      %v1479 = vpop.permute.xlu0 %1478
      %1481 = vset.pattern.permute.xlu0 1
      %1482 = vperm.xlu0 %1481, %v1134
      %v1483 = vpop.permute.xlu0 %1482
      %1485 = vset.pattern.permute.xlu0 1
      %1486 = vperm.xlu0 %1485, %v1135
      %v1487 = vpop.permute.xlu0 %1486
      %1489 = vset.pattern.permute.xlu0 1
      %1490 = vperm.xlu0 %1489, %v1136
      %v1491 = vpop.permute.xlu0 %1490
      %v1493 = vperm.slane %v1364, 0
      %v1494 = vmul.f32 %v1367, %v1493
      %v1495 = vmul.f32 %v1371, %v1493
      %v1496 = vmul.f32 %v1375, %v1493
      %v1497 = vmul.f32 %v1379, %v1493
      %v1498 = vmul.f32 %v1383, %v1493
      %v1499 = vmul.f32 %v1387, %v1493
      %v1500 = vmul.f32 %v1391, %v1493
      %v1501 = vmul.f32 %v1395, %v1493
      %v1502 = vmul.f32 %v1399, %v1493
      %v1503 = vmul.f32 %v1403, %v1493
      %v1504 = vmul.f32 %v1407, %v1493
      %v1505 = vmul.f32 %v1411, %v1493
      %v1506 = vmul.f32 %v1415, %v1493
      %v1507 = vmul.f32 %v1419, %v1493
      %v1508 = vmul.f32 %v1423, %v1493
      %v1509 = vmul.f32 %v1427, %v1493
      %v1510 = vmul.f32 %v1431, %v1493
      %v1511 = vmul.f32 %v1435, %v1493
      %v1512 = vmul.f32 %v1439, %v1493
      %v1513 = vmul.f32 %v1443, %v1493
      %v1514 = vmul.f32 %v1447, %v1493
      %v1515 = vmul.f32 %v1451, %v1493
      %v1516 = vmul.f32 %v1455, %v1493
      %v1517 = vmul.f32 %v1459, %v1493
      %v1518 = vmul.f32 %v1463, %v1493
      %v1519 = vmul.f32 %v1467, %v1493
      %v1520 = vmul.f32 %v1471, %v1493
      %v1521 = vmul.f32 %v1475, %v1493
      %v1522 = vmul.f32 %v1479, %v1493
      %v1523 = vmul.f32 %v1483, %v1493
      %v1524 = vmul.f32 %v1487, %v1493
      %v1525 = vmul.f32 %v1491, %v1493
      %v1526 = vadd.f32 %v1332, %v1494
      %v1527 = vadd.f32 %v1333, %v1495
      %v1528 = vadd.f32 %v1334, %v1496
      %v1529 = vadd.f32 %v1335, %v1497
      %v1530 = vadd.f32 %v1336, %v1498
      %v1531 = vadd.f32 %v1337, %v1499
      %v1532 = vadd.f32 %v1338, %v1500
      %v1533 = vadd.f32 %v1339, %v1501
      %v1534 = vadd.f32 %v1340, %v1502
      %v1535 = vadd.f32 %v1341, %v1503
      %v1536 = vadd.f32 %v1342, %v1504
      %v1537 = vadd.f32 %v1343, %v1505
      %v1538 = vadd.f32 %v1344, %v1506
      %v1539 = vadd.f32 %v1345, %v1507
      %v1540 = vadd.f32 %v1346, %v1508
      %v1541 = vadd.f32 %v1347, %v1509
      %v1542 = vadd.f32 %v1348, %v1510
      %v1543 = vadd.f32 %v1349, %v1511
      %v1544 = vadd.f32 %v1350, %v1512
      %v1545 = vadd.f32 %v1351, %v1513
      %v1546 = vadd.f32 %v1352, %v1514
      %v1547 = vadd.f32 %v1353, %v1515
      %v1548 = vadd.f32 %v1354, %v1516
      %v1549 = vadd.f32 %v1355, %v1517
      %v1550 = vadd.f32 %v1356, %v1518
      %v1551 = vadd.f32 %v1357, %v1519
      %v1552 = vadd.f32 %v1358, %v1520
      %v1553 = vadd.f32 %v1359, %v1521
      %v1554 = vadd.f32 %v1360, %v1522
      %v1555 = vadd.f32 %v1361, %v1523
      %v1556 = vadd.f32 %v1362, %v1524
      %v1557 = vadd.f32 %v1363, %v1525
      %v1558 = vld [vmem:[%s2] sm:$0x1]
      %v1560 = vperm.slane %v1558, 0
      %v1562 = vadd.f32 %v1526, %v1560
      %v1563 = vadd.f32 %v1527, %v1560
      %v1564 = vadd.f32 %v1528, %v1560
      %v1565 = vadd.f32 %v1529, %v1560
      %v1566 = vadd.f32 %v1530, %v1560
      %v1567 = vadd.f32 %v1531, %v1560
      %v1568 = vadd.f32 %v1532, %v1560
      %v1569 = vadd.f32 %v1533, %v1560
      %v1570 = vadd.f32 %v1534, %v1560
      %v1571 = vadd.f32 %v1535, %v1560
      %v1572 = vadd.f32 %v1536, %v1560
      %v1573 = vadd.f32 %v1537, %v1560
      %v1574 = vadd.f32 %v1538, %v1560
      %v1575 = vadd.f32 %v1539, %v1560
      %v1576 = vadd.f32 %v1540, %v1560
      %v1577 = vadd.f32 %v1541, %v1560
      %v1578 = vadd.f32 %v1542, %v1560
      %v1579 = vadd.f32 %v1543, %v1560
      %v1580 = vadd.f32 %v1544, %v1560
      %v1581 = vadd.f32 %v1545, %v1560
      %v1582 = vadd.f32 %v1546, %v1560
      %v1583 = vadd.f32 %v1547, %v1560
      %v1584 = vadd.f32 %v1548, %v1560
      %v1585 = vadd.f32 %v1549, %v1560
      %v1586 = vadd.f32 %v1550, %v1560
      %v1587 = vadd.f32 %v1551, %v1560
      %v1588 = vadd.f32 %v1552, %v1560
      %v1589 = vadd.f32 %v1553, %v1560
      %v1590 = vadd.f32 %v1554, %v1560
      %v1591 = vadd.f32 %v1555, %v1560
      %v1592 = vadd.f32 %v1556, %v1560
      %v1593 = vadd.f32 %v1557, %v1560
      %v1594 = vmax.f32 %v1562, 0.0
      %v1595 = vmax.f32 %v1563, 0.0
      %v1596 = vmax.f32 %v1564, 0.0
      %v1597 = vmax.f32 %v1565, 0.0
      %v1598 = vmax.f32 %v1566, 0.0
      %v1599 = vmax.f32 %v1567, 0.0
      %v1600 = vmax.f32 %v1568, 0.0
      %v1601 = vmax.f32 %v1569, 0.0
      %v1602 = vmax.f32 %v1570, 0.0
      %v1603 = vmax.f32 %v1571, 0.0
      %v1604 = vmax.f32 %v1572, 0.0
      %v1605 = vmax.f32 %v1573, 0.0
      %v1606 = vmax.f32 %v1574, 0.0
      %v1607 = vmax.f32 %v1575, 0.0
      %v1608 = vmax.f32 %v1576, 0.0
      %v1609 = vmax.f32 %v1577, 0.0
      %v1610 = vmax.f32 %v1578, 0.0
      %v1611 = vmax.f32 %v1579, 0.0
      %v1612 = vmax.f32 %v1580, 0.0
      %v1613 = vmax.f32 %v1581, 0.0
      %v1614 = vmax.f32 %v1582, 0.0
      %v1615 = vmax.f32 %v1583, 0.0
      %v1616 = vmax.f32 %v1584, 0.0
      %v1617 = vmax.f32 %v1585, 0.0
      %v1618 = vmax.f32 %v1586, 0.0
      %v1619 = vmax.f32 %v1587, 0.0
      %v1620 = vmax.f32 %v1588, 0.0
      %v1621 = vmax.f32 %v1589, 0.0
      %v1622 = vmax.f32 %v1590, 0.0
      %v1623 = vmax.f32 %v1591, 0.0
      %v1624 = vmax.f32 %v1592, 0.0
      %v1625 = vmax.f32 %v1593, 0.0
      %vm1626 = vcmask 261120
      %1627 = vst.msk [vmem:[%s192] sm:$0xff] %vm1626, %v1594
      %1628 = vst.msk [vmem:[%s192 + $0x8] sm:$0xff] %vm1626, %v1595
      %1629 = vst.msk [vmem:[%s192 + $0x10] sm:$0xff] %vm1626, %v1596
      %1630 = vst.msk [vmem:[%s192 + $0x18] sm:$0xff] %vm1626, %v1597
      %1631 = vst.msk [vmem:[%s192 + $0x20] sm:$0xff] %vm1626, %v1598
      %1632 = vst.msk [vmem:[%s192 + $0x28] sm:$0xff] %vm1626, %v1599
      %1633 = vst.msk [vmem:[%s192 + $0x30] sm:$0xff] %vm1626, %v1600
      %1634 = vst.msk [vmem:[%s192 + $0x38] sm:$0xff] %vm1626, %v1601
      %1635 = vst.msk [vmem:[%s192 + $0x40] sm:$0xff] %vm1626, %v1602
      %1636 = vst.msk [vmem:[%s192 + $0x48] sm:$0xff] %vm1626, %v1603
      %1637 = vst.msk [vmem:[%s192 + $0x50] sm:$0xff] %vm1626, %v1604
      %1638 = vst.msk [vmem:[%s192 + $0x58] sm:$0xff] %vm1626, %v1605
      %1639 = vst.msk [vmem:[%s192 + $0x60] sm:$0xff] %vm1626, %v1606
      %1640 = vst.msk [vmem:[%s192 + $0x68] sm:$0xff] %vm1626, %v1607
      %1641 = vst.msk [vmem:[%s192 + $0x70] sm:$0xff] %vm1626, %v1608
      %1642 = vst.msk [vmem:[%s192 + $0x78] sm:$0xff] %vm1626, %v1609
      %1643 = vst.msk [vmem:[%s192 + $0x80] sm:$0xff] %vm1626, %v1610
      %1644 = vst.msk [vmem:[%s192 + $0x88] sm:$0xff] %vm1626, %v1611
      %1645 = vst.msk [vmem:[%s192 + $0x90] sm:$0xff] %vm1626, %v1612
      %1646 = vst.msk [vmem:[%s192 + $0x98] sm:$0xff] %vm1626, %v1613
      %1647 = vst.msk [vmem:[%s192 + $0xa0] sm:$0xff] %vm1626, %v1614
      %1648 = vst.msk [vmem:[%s192 + $0xa8] sm:$0xff] %vm1626, %v1615
      %1649 = vst.msk [vmem:[%s192 + $0xb0] sm:$0xff] %vm1626, %v1616
      %1650 = vst.msk [vmem:[%s192 + $0xb8] sm:$0xff] %vm1626, %v1617
      %1651 = vst.msk [vmem:[%s192 + $0xc0] sm:$0xff] %vm1626, %v1618
      %1652 = vst.msk [vmem:[%s192 + $0xc8] sm:$0xff] %vm1626, %v1619
      %1653 = vst.msk [vmem:[%s192 + $0xd0] sm:$0xff] %vm1626, %v1620
      %1654 = vst.msk [vmem:[%s192 + $0xd8] sm:$0xff] %vm1626, %v1621
      %1655 = vst.msk [vmem:[%s192 + $0xe0] sm:$0xff] %vm1626, %v1622
      %1656 = vst.msk [vmem:[%s192 + $0xe8] sm:$0xff] %vm1626, %v1623
      %1657 = vst.msk [vmem:[%s192 + $0xf0] sm:$0xff] %vm1626, %v1624
      %1658 = vst.msk [vmem:[%s192 + $0xf8] sm:$0xff] %vm1626, %v1625
      %s1659 = smul.u32 32, %s19
      %p1660 = scmp.lt.s32.totalorder %s18, 1
      %s1661 = scalar_select %p1660, %s18, 1
      %p1662 = scmp.lt.s32.totalorder %s1659, 31
      %s1663 = scalar_select %p1662, %s1659, 31
      %s1664 = smul.addr %s1661, 32
      %s1665 = sadd.s32 %s1663, %s1664
      %s1666 = smul.addr %s1665, 8
      %s1667 = scalar_lea.vmem %s3, %s1666
      // Predicated region
      $region33: #{tpu_custom_call.1} parent=31 // pred_check
        %p1668 = pneg %p114
      $region34: #{tpu_custom_call.1} parent=31 // pred_check_branch
        %1670 = sbr.rel (%p1668) target = $region36
      $region35: #{tpu_custom_call.1} parent=31 // pred_region
        %s1671 = smul.u32 32, %s19
      $region36: #{tpu_custom_call.1} parent=31 // pred_fallthru
        _
    $region32: #{tpu_custom_call.1} parent=5 // pred_fallthru
      _
    %p1672 = scmp.le.s32.totalorder 2, %s9
    // Predicated region
    $region37: #{tpu_custom_call.1} parent=5 // pred_check
      %p1673 = pneg %p1672
    $region38: #{tpu_custom_call.1} parent=5 // pred_check_branch
      %1675 = sbr.rel (%p1673) target = $region40
    $region39: #{tpu_custom_call.1} parent=5 // pred_region
      %s1676 = ssub.s32 %s9, 2
      // Predicated region
      $region41: #{tpu_custom_call.1} parent=39 // pred_check
        %p1677 = pneg %p120
      $region42: #{tpu_custom_call.1} parent=39 // pred_check_branch
        %1679 = sbr.rel (%p1677) target = $region44
      $region43: #{tpu_custom_call.1} parent=39 // pred_region
        %s1680 = smul.u32 32, %s21
        %p1681 = scmp.lt.s32.totalorder %s20, 1
        %s1682 = scalar_select %p1681, %s20, 1
        %p1683 = scmp.lt.s32.totalorder %s1680, 31
        %s1684 = scalar_select %p1683, %s1680, 31
        %s1685 = smul.addr %s1682, 32
        %s1686 = sadd.s32 %s1684, %s1685
        %s1687 = smul.addr %s1686, 8
        %s1688 = scalar_lea.vmem %s3, %s1687
      $region44: #{tpu_custom_call.1} parent=39 // pred_fallthru
        _
    $region40: #{tpu_custom_call.1} parent=5 // pred_fallthru
      _
  $region6: #{tpu_custom_call.1} parent=0 // loop_footer
    %s13 = sadd.s32 1, %s9
  $region7: #{tpu_custom_call.1} parent=0 // loop_footer_branch
    %8 = sbr.rel target = $region3
  $region8: #{tpu_custom_call.1} parent=0 // loop_exit
    _

</llo_original>
